<compile_context>
chip_gen: v5e
topology: v5e:2x2
jax: 0.10.0
libtpu: 0.0.40
codegen_flags: <defaults>
</compile_context>

<pallas_src>
import functools

import jax
import jax.numpy as jnp
import numpy as np
from jax import lax
from jax.experimental import pallas as pl
from jax.experimental.pallas import tpu as pltpu

# qtorch FixedPoint(wl=64, fl=40), "nearest" rounding (reference only).
FL = 40
WL = 64
_Q_SCALE = 2.0 ** FL
_Q_MAX = 2.0 ** (WL - FL - 1) - 2.0 ** (-FL)
_Q_MIN = -(2.0 ** (WL - FL - 1))
_BN_EPS = 1e-5
_NEG_INF = -1e30


def _quant(x):
    # ~identity at f32 precision; kept only for the plain-JAX reference.
    return jnp.clip(jnp.floor(x * _Q_SCALE + 0.5) / _Q_SCALE, _Q_MIN, _Q_MAX)


def _round_up(n, m):
    return ((n + m - 1) // m) * m


def _transformer_kernel(B, L, Lp, C, H,
                        x_ref,    # (B*Lp, C)    zero-padded input rows
                        w_ref,    # (C, 6C)      [wq | wk | wv | wo | w2]
                        w5_ref,   # (2C, C)
                        p_ref,    # (8 + 2*Lp, max(2C, Lp)) packed small params
                        o_ref):   # (B*Lp, C)
    hd = C // H
    BLp = B * Lp
    x = x_ref[...]
    w = w_ref[...]
    p = p_ref[...]

    # ---- unpack packed parameters (each used exactly once) ----
    g_norm = p[0:1, 0:C]
    b_norm = p[1:2, 0:C]
    bo     = p[2:3, 0:C]
    g0     = p[3:4, 0:C]
    b0     = p[4:5, 0:C]
    g3     = p[5:6, 0:2 * C]
    b3     = p[6:7, 0:2 * C]
    g_pe   = p[8:8 + Lp, 0:Lp]                  # (Lp, Lp), zero padded
    b_pe   = p[8 + Lp:8 + 2 * Lp, 0:Lp]

    wqkv = w[:, 0:3 * C]
    wo   = w[:, 3 * C:4 * C]
    w2   = w[:, 4 * C:6 * C]

    # ---- row validity mask: padded rows excluded from BN statistics ----
    row_ids = lax.broadcasted_iota(jnp.int32, (BLp, 1), 0)
    if Lp & (Lp - 1) == 0:
        row_in_blk = jnp.bitwise_and(row_ids, Lp - 1)
    else:
        row_in_blk = row_ids % Lp
    row_mask = (row_in_blk < L).astype(jnp.float32)          # (BLp, 1)
    inv_n = 1.0 / float(B * L)

    def bn_rows(t, g, b):
        # BatchNorm1d over channels; one-pass stats over the B*L valid rows.
        tm = t * row_mask
        mean = jnp.sum(tm, axis=0, keepdims=True) * inv_n
        var = jnp.maximum(
            jnp.sum(tm * t, axis=0, keepdims=True) * inv_n - mean * mean, 0.0)
        return (t - mean) * lax.rsqrt(var + _BN_EPS) * g + b

    # ---------------- self-attention block ----------------
    out = bn_rows(x, g_norm, b_norm)                          # (BLp, C)
    qkv = jnp.dot(out, wqkv, preferred_element_type=jnp.float32)
    q = qkv[:, 0:C]
    k = qkv[:, C:2 * C]
    v = qkv[:, 2 * C:3 * C]

    # Per-head energies on the padded block layout; the valid energies live on
    # the B diagonal (Lp, Lp) blocks of the (BLp, BLp) matrix.
    blocks = []                                               # index [h*B + b]
    for h in range(H):
        qh = q[:, h * hd:(h + 1) * hd]
        kh = k[:, h * hd:(h + 1) * hd]
        e = lax.dot_general(qh, kh, (((1,), (1,)), ((), ())),
                            preferred_element_type=jnp.float32)   # (BLp, BLp)
        for b in range(B):
            blocks.append(e[b * Lp:(b + 1) * Lp, b * Lp:(b + 1) * Lp])

    # pre_exp_norm: BatchNorm1d over the (q, k) channel grid, statistics over
    # the (batch, head) samples.  Two-pass over only B*H small terms.
    inv_bh = 1.0 / float(B * H)
    mean_e = blocks[0]
    for blk in blocks[1:]:
        mean_e = mean_e + blk
    mean_e = mean_e * inv_bh
    var_e = (blocks[0] - mean_e) * (blocks[0] - mean_e)
    for blk in blocks[1:]:
        var_e = var_e + (blk - mean_e) * (blk - mean_e)
    inv_e = lax.rsqrt(var_e * inv_bh + _BN_EPS)

    inv_sqrt_c = 1.0 / float(np.sqrt(C))
    col_valid = lax.broadcasted_iota(jnp.int32, (1, Lp), 1) < L
    neg_blk = jnp.full((Lp, Lp), _NEG_INF, dtype=jnp.float32)

    head_outs = []
    for h in range(H):
        row_blocks = []
        for b in range(B):
            blk = blocks[h * B + b]
            en = (blk - mean_e) * inv_e * g_pe + b_pe
            logits = jnp.where(col_valid, en * inv_sqrt_c, _NEG_INF)
            row = [logits if j == b else neg_blk for j in range(B)]
            row_blocks.append(row[0] if B == 1
                              else jnp.concatenate(row, axis=1))
        full_logits = (row_blocks[0] if B == 1
                       else jnp.concatenate(row_blocks, axis=0))  # (BLp, BLp)
        mx = jnp.max(full_logits, axis=-1, keepdims=True)
        ex = jnp.exp(full_logits - mx)                 # masked entries -> 0
        denom = jnp.sum(ex, axis=-1, keepdims=True)
        attn = ex * pl.reciprocal(denom, approx=False)
        vh = v[:, h * hd:(h + 1) * hd]
        head_outs.append(jnp.dot(attn, vh, preferred_element_type=jnp.float32))
    attn_out = head_outs[0] if H == 1 else jnp.concatenate(head_outs, axis=-1)

    # output projection (with bias) + residual
    sa = jnp.dot(attn_out, wo, preferred_element_type=jnp.float32) + bo
    sa_final = sa + x                                         # (BLp, C)

    # ---------------- feed-forward block ----------------
    out1 = jnp.maximum(bn_rows(sa_final, g0, b0), 0.0)
    out2 = jnp.dot(out1, w2, preferred_element_type=jnp.float32)
    out4 = jnp.maximum(bn_rows(out2, g3, b3), 0.0)
    out5 = jnp.dot(out4, w5_ref[...], preferred_element_type=jnp.float32)

    o_ref[...] = sa_final + out5


def pack_params(params, seq_len):
    """One-time packing of the small parameter tensors into a few aligned
    buffers (hoisted out of the per-call path)."""
    C = int(params["wq_t"].shape[0])
    L = int(seq_len)
    Lp = _round_up(L, 8)
    lanes = max(2 * C, Lp)

    w_cat = jnp.concatenate(
        [params["wq_t"], params["wk_t"], params["wv_t"],
         params["wo_t"], params["w2_t"]], axis=1)             # (C, 6C)

    small = jnp.zeros((8, lanes), jnp.float32)
    for i, name in enumerate(["g_norm", "b_norm", "bo", "g0", "b0", "g3", "b3"]):
        vec = params[name].reshape(-1)
        small = small.at[i, :vec.shape[0]].set(vec)

    def pad_pe(t):
        buf = jnp.zeros((Lp, lanes), jnp.float32)
        return buf.at[:L, :L].set(t)

    pbuf = jnp.concatenate(
        [small, pad_pe(params["g_pe"]), pad_pe(params["b_pe"])], axis=0)

    return dict(num_heads=int(params["num_heads"]), L=L, Lp=Lp, C=C,
                w_cat=w_cat, w5=params["w5_t"], pbuf=pbuf)


def transformer_forward(x, packed):
    B, L, C = x.shape
    H = packed["num_heads"]
    Lp = packed["Lp"]
    assert L == packed["L"] and C == packed["C"] and C % H == 0

    # zero-pad each batch block from L to Lp rows, flatten to (B*Lp, C)
    x_pad = jnp.zeros((B, Lp, C), jnp.float32).at[:, :L, :].set(x)
    x_pad = x_pad.reshape(B * Lp, C)

    kernel = functools.partial(_transformer_kernel, B, L, Lp, C, H)
    vmem = functools.partial(pl.BlockSpec, memory_space=pltpu.MemorySpace.VMEM)
    out_pad = pl.pallas_call(
        kernel,
        out_shape=jax.ShapeDtypeStruct((B * Lp, C), jnp.float32),
        in_specs=[vmem(), vmem(), vmem(), vmem()],
        out_specs=vmem(),
    )(x_pad, packed["w_cat"], packed["w5"], packed["pbuf"])
    return out_pad.reshape(B, Lp, C)[:, :L, :]


# ---------------- deterministic parameter init ----------------
def init_params(key, in_dim, seq_len, num_heads):
    def lin(k, fan_in, fan_out):
        bound = 1.0 / np.sqrt(fan_in)
        return jax.random.uniform(k, (fan_in, fan_out), jnp.float32, -bound, bound)

    ks = jax.random.split(key, 8)
    return dict(
        num_heads=num_heads,
        g_norm=jnp.ones((1, in_dim), jnp.float32),
        b_norm=jnp.zeros((1, in_dim), jnp.float32),
        wq_t=lin(ks[0], in_dim, in_dim),
        wk_t=lin(ks[1], in_dim, in_dim),
        wv_t=lin(ks[2], in_dim, in_dim),
        wo_t=lin(ks[3], in_dim, in_dim),
        bo=jax.random.uniform(ks[4], (1, in_dim), jnp.float32,
                              -1.0 / np.sqrt(in_dim), 1.0 / np.sqrt(in_dim)),
        # pre_exp_norm has (num_particles+1)^2 = seq_len^2 channels -> (L, L)
        g_pe=jnp.ones((seq_len, seq_len), jnp.float32),
        b_pe=jnp.zeros((seq_len, seq_len), jnp.float32),
        g0=jnp.ones((1, in_dim), jnp.float32),
        b0=jnp.zeros((1, in_dim), jnp.float32),
        w2_t=lin(ks[5], in_dim, 2 * in_dim),
        g3=jnp.ones((1, 2 * in_dim), jnp.float32),
        b3=jnp.zeros((1, 2 * in_dim), jnp.float32),
        w5_t=lin(ks[6], 2 * in_dim, in_dim),
    )


# -------- plain-JAX reference (mirrors the torch forward, incl. quant) --------
def ref_forward(x, p):
    B, L, C = x.shape
    H = p["num_heads"]
    hd = C // H

    def bn(xf, g, b):
        mean = jnp.mean(xf, axis=0, keepdims=True)
        var = jnp.mean((xf - mean) ** 2, axis=0, keepdims=True)
        return (xf - mean) * lax.rsqrt(var + _BN_EPS) * g + b

    xf = x.reshape(B * L, C)
    out = _quant(bn(xf, p["g_norm"], p["b_norm"]))
    out_q = _quant(out @ p["wq_t"])
    out_k = _quant(out @ p["wk_t"])
    out_v = _quant(out @ p["wv_t"])
    q = out_q.reshape(B, L, H, hd)
    k = out_k.reshape(B, L, H, hd)
    v = out_v.reshape(B, L, H, hd)
    energy = _quant(jnp.einsum("nqhc,nkhc->nhqk", q, k))          # (B,H,L,L)
    ef = energy.reshape(B, H, L * L)
    mean = jnp.mean(ef, axis=(0, 1))
    var = jnp.mean((ef - mean) ** 2, axis=(0, 1))
    en = _quant((ef - mean) * lax.rsqrt(var + _BN_EPS)
                * p["g_pe"].reshape(-1) + p["b_pe"].reshape(-1))
    en = en.reshape(B, H, L, L)
    attn = _quant(jax.nn.softmax(en / np.sqrt(C), axis=-1))
    o = _quant(jnp.einsum("nhql,nlhc->nqhc", attn, v)).reshape(B * L, C)
    sa = _quant(o @ p["wo_t"] + p["bo"])
    saf = _quant(sa + xf)
    out0 = _quant(bn(saf, p["g0"], p["b0"]))
    out1 = _quant(jnp.maximum(out0, 0.0))
    out2 = _quant(out1 @ p["w2_t"])
    out3 = _quant(bn(out2, p["g3"], p["b3"]))
    out4 = _quant(jnp.maximum(out3, 0.0))
    out5 = _quant(out4 @ p["w5_t"])
    return _quant(saf + out5).reshape(B, L, C)


if __name__ == "__main__":
    B = 2
    NUM_HEADS = 1
    IN_DIM = 32
    NUM_PARTICLES = 30
    SEQ = NUM_PARTICLES + 1   # pre_exp_norm has (30+1)^2 channels -> seq_len = 31

    key = jax.random.PRNGKey(0)
    kx, kp = jax.random.split(key)
    x = jax.random.normal(kx, (B, SEQ, IN_DIM), jnp.float32)
    params = init_params(kp, IN_DIM, SEQ, NUM_HEADS)
    packed = pack_params(params, SEQ)        # one-time packing, hoisted

    out = transformer_forward(x, packed)
    out = jax.block_until_ready(out)
    assert out.shape == (B, SEQ, IN_DIM)

    ref = ref_forward(x, params)
    np.testing.assert_allclose(np.asarray(out), np.asarray(ref),
                               rtol=2e-3, atol=2e-3)
    print("KERNEL_OK")
</pallas_src>

<mosaic_0001>
module attributes {stable_mosaic.version = 11 : i64} {
  func.func @_transformer_kernel(%arg0: memref<64x32xf32, #tpu.memory_space<vmem>>, %arg1: memref<32x192xf32, #tpu.memory_space<vmem>>, %arg2: memref<64x32xf32, #tpu.memory_space<vmem>>, %arg3: memref<72x64xf32, #tpu.memory_space<vmem>>, %arg4: memref<64x32xf32, #tpu.memory_space<vmem>>) attributes {dimension_semantics = [], scalar_prefetch = 0 : i64, scratch_operands = 0 : i64, tpu.core_type = #tpu.core_type<tc>} {
    %c0 = arith.constant 0 : index
    %c0_0 = arith.constant 0 : index
    %0 = vector.load %arg0[%c0, %c0_0] : memref<64x32xf32, #tpu.memory_space<vmem>>, vector<64x32xf32>
    %c0_1 = arith.constant 0 : index
    %c0_2 = arith.constant 0 : index
    %1 = vector.load %arg1[%c0_1, %c0_2] : memref<32x192xf32, #tpu.memory_space<vmem>>, vector<32x192xf32>
    %c0_3 = arith.constant 0 : index
    %c0_4 = arith.constant 0 : index
    %2 = vector.load %arg3[%c0_3, %c0_4] : memref<72x64xf32, #tpu.memory_space<vmem>>, vector<72x64xf32>
    %3 = vector.extract_strided_slice %2 {offsets = [0, 0], sizes = [1, 32], strides = [1, 1]} : vector<72x64xf32> to vector<1x32xf32>
    %4 = vector.extract_strided_slice %2 {offsets = [1, 0], sizes = [1, 32], strides = [1, 1]} : vector<72x64xf32> to vector<1x32xf32>
    %5 = vector.extract_strided_slice %2 {offsets = [2, 0], sizes = [1, 32], strides = [1, 1]} : vector<72x64xf32> to vector<1x32xf32>
    %6 = vector.extract_strided_slice %2 {offsets = [3, 0], sizes = [1, 32], strides = [1, 1]} : vector<72x64xf32> to vector<1x32xf32>
    %7 = vector.extract_strided_slice %2 {offsets = [4, 0], sizes = [1, 32], strides = [1, 1]} : vector<72x64xf32> to vector<1x32xf32>
    %8 = vector.extract_strided_slice %2 {offsets = [5, 0], sizes = [1, 64], strides = [1, 1]} : vector<72x64xf32> to vector<1x64xf32>
    %9 = vector.extract_strided_slice %2 {offsets = [6, 0], sizes = [1, 64], strides = [1, 1]} : vector<72x64xf32> to vector<1x64xf32>
    %10 = vector.extract_strided_slice %2 {offsets = [8, 0], sizes = [32, 32], strides = [1, 1]} : vector<72x64xf32> to vector<32x32xf32>
    %11 = vector.extract_strided_slice %2 {offsets = [40, 0], sizes = [32, 32], strides = [1, 1]} : vector<72x64xf32> to vector<32x32xf32>
    %12 = vector.extract_strided_slice %1 {offsets = [0, 0], sizes = [32, 96], strides = [1, 1]} : vector<32x192xf32> to vector<32x96xf32>
    %13 = vector.extract_strided_slice %1 {offsets = [0, 96], sizes = [32, 32], strides = [1, 1]} : vector<32x192xf32> to vector<32x32xf32>
    %14 = vector.extract_strided_slice %1 {offsets = [0, 128], sizes = [32, 64], strides = [1, 1]} : vector<32x192xf32> to vector<32x64xf32>
    %15 = tpu.iota {dimensions = array<i32: 0>} : vector<64x1xi32>
    %c31_i32 = arith.constant 31 : i32
    %16 = vector.broadcast %c31_i32 : i32 to vector<64x1xi32>
    %17 = arith.andi %15, %16 : vector<64x1xi32>
    %c31_i32_5 = arith.constant 31 : i32
    %18 = vector.broadcast %c31_i32_5 : i32 to vector<64x1xi32>
    %19 = arith.cmpi slt, %17, %18 : vector<64x1xi32>
    %20 = arith.extui %19 : vector<64x1xi1> to vector<64x1xi32>
    %21 = arith.sitofp %20 : vector<64x1xi32> to vector<64x1xf32>
    %22 = vector.broadcast %21 : vector<64x1xf32> to vector<64x32xf32>
    %23 = arith.mulf %0, %22 : vector<64x32xf32>
    %cst = arith.constant dense<0.000000e+00> : vector<32xf32>
    %24 = vector.multi_reduction <add>, %23, %cst [0] : vector<64x32xf32> to vector<32xf32>
    %25 = vector.shape_cast %24 : vector<32xf32> to vector<1x32xf32>
    %cst_6 = arith.constant 0.0161290318 : f32
    %26 = vector.broadcast %cst_6 : f32 to vector<1x32xf32>
    %27 = arith.mulf %25, %26 : vector<1x32xf32>
    %28 = arith.mulf %23, %0 : vector<64x32xf32>
    %cst_7 = arith.constant dense<0.000000e+00> : vector<32xf32>
    %29 = vector.multi_reduction <add>, %28, %cst_7 [0] : vector<64x32xf32> to vector<32xf32>
    %30 = vector.shape_cast %29 : vector<32xf32> to vector<1x32xf32>
    %cst_8 = arith.constant 0.0161290318 : f32
    %31 = vector.broadcast %cst_8 : f32 to vector<1x32xf32>
    %32 = arith.mulf %30, %31 : vector<1x32xf32>
    %33 = arith.mulf %27, %27 : vector<1x32xf32>
    %34 = arith.subf %32, %33 : vector<1x32xf32>
    %cst_9 = arith.constant 0.000000e+00 : f32
    %35 = vector.broadcast %cst_9 : f32 to vector<1x32xf32>
    %36 = arith.maximumf %34, %35 : vector<1x32xf32>
    %37 = vector.broadcast %27 : vector<1x32xf32> to vector<64x32xf32>
    %38 = arith.subf %0, %37 : vector<64x32xf32>
    %cst_10 = arith.constant 9.99999974E-6 : f32
    %39 = vector.broadcast %cst_10 : f32 to vector<1x32xf32>
    %40 = arith.addf %36, %39 : vector<1x32xf32>
    %41 = math.rsqrt %40 : vector<1x32xf32>
    %42 = vector.broadcast %41 : vector<1x32xf32> to vector<64x32xf32>
    %43 = arith.mulf %38, %42 : vector<64x32xf32>
    %44 = vector.broadcast %3 : vector<1x32xf32> to vector<64x32xf32>
    %45 = arith.mulf %43, %44 : vector<64x32xf32>
    %46 = vector.broadcast %4 : vector<1x32xf32> to vector<64x32xf32>
    %47 = arith.addf %45, %46 : vector<64x32xf32>
    %cst_11 = arith.constant dense<0.000000e+00> : vector<64x96xf32>
    %48 = tpu.matmul %47, %12, %cst_11 {dimension_numbers = #tpu.dot_dimension_numbers<[1], [0], [0], [1], [0, 0, 1, 1], [], []>} : vector<64x32xf32>, vector<32x96xf32>, vector<64x96xf32> -> vector<64x96xf32>
    %49 = vector.extract_strided_slice %48 {offsets = [0, 0], sizes = [64, 32], strides = [1, 1]} : vector<64x96xf32> to vector<64x32xf32>
    %50 = vector.extract_strided_slice %48 {offsets = [0, 32], sizes = [64, 32], strides = [1, 1]} : vector<64x96xf32> to vector<64x32xf32>
    %51 = vector.extract_strided_slice %48 {offsets = [0, 64], sizes = [64, 32], strides = [1, 1]} : vector<64x96xf32> to vector<64x32xf32>
    %cst_12 = arith.constant dense<0.000000e+00> : vector<64x64xf32>
    %52 = tpu.matmul %49, %50, %cst_12 {dimension_numbers = #tpu.dot_dimension_numbers<[1], [1], [0], [0], [0, 0, 1, 0], [], []>} : vector<64x32xf32>, vector<64x32xf32>, vector<64x64xf32> -> vector<64x64xf32>
    %53 = vector.extract_strided_slice %52 {offsets = [0, 0], sizes = [32, 32], strides = [1, 1]} : vector<64x64xf32> to vector<32x32xf32>
    %54 = vector.extract_strided_slice %52 {offsets = [32, 32], sizes = [32, 32], strides = [1, 1]} : vector<64x64xf32> to vector<32x32xf32>
    %55 = arith.addf %53, %54 : vector<32x32xf32>
    %cst_13 = arith.constant 5.000000e-01 : f32
    %56 = vector.broadcast %cst_13 : f32 to vector<32x32xf32>
    %57 = arith.mulf %55, %56 : vector<32x32xf32>
    %58 = arith.subf %53, %57 : vector<32x32xf32>
    %59 = arith.subf %53, %57 : vector<32x32xf32>
    %60 = arith.mulf %58, %59 : vector<32x32xf32>
    %61 = arith.subf %54, %57 : vector<32x32xf32>
    %62 = arith.subf %54, %57 : vector<32x32xf32>
    %63 = arith.mulf %61, %62 : vector<32x32xf32>
    %64 = arith.addf %60, %63 : vector<32x32xf32>
    %cst_14 = arith.constant 5.000000e-01 : f32
    %65 = vector.broadcast %cst_14 : f32 to vector<32x32xf32>
    %66 = arith.mulf %64, %65 : vector<32x32xf32>
    %cst_15 = arith.constant 9.99999974E-6 : f32
    %67 = vector.broadcast %cst_15 : f32 to vector<32x32xf32>
    %68 = arith.addf %66, %67 : vector<32x32xf32>
    %69 = math.rsqrt %68 : vector<32x32xf32>
    %70 = tpu.iota {dimensions = array<i32: 1>} : vector<1x32xi32>
    %c31_i32_16 = arith.constant 31 : i32
    %71 = vector.broadcast %c31_i32_16 : i32 to vector<1x32xi32>
    %72 = arith.cmpi slt, %70, %71 : vector<1x32xi32>
    %cst_17 = arith.constant -1.000000e+30 : f32
    %73 = vector.broadcast %cst_17 : f32 to vector<32x32xf32>
    %74 = arith.subf %53, %57 : vector<32x32xf32>
    %75 = arith.mulf %74, %69 : vector<32x32xf32>
    %76 = arith.mulf %75, %10 : vector<32x32xf32>
    %77 = arith.addf %76, %11 : vector<32x32xf32>
    %cst_18 = arith.constant 0.176776692 : f32
    %78 = vector.broadcast %cst_18 : f32 to vector<32x32xf32>
    %79 = arith.mulf %77, %78 : vector<32x32xf32>
    %cst_19 = arith.constant -1.000000e+30 : f32
    %80 = vector.shape_cast %72 : vector<1x32xi1> to vector<1x32xi1>
    %81 = vector.broadcast %80 : vector<1x32xi1> to vector<32x32xi1>
    %82 = vector.broadcast %cst_19 : f32 to vector<32x32xf32>
    %83 = arith.select %81, %79, %82 : vector<32x32xi1>, vector<32x32xf32>
    %84 = tpu.concatenate %83, %73 in 1 : vector<32x32xf32>, vector<32x32xf32> -> vector<32x64xf32>
    %85 = arith.subf %54, %57 : vector<32x32xf32>
    %86 = arith.mulf %85, %69 : vector<32x32xf32>
    %87 = arith.mulf %86, %10 : vector<32x32xf32>
    %88 = arith.addf %87, %11 : vector<32x32xf32>
    %cst_20 = arith.constant 0.176776692 : f32
    %89 = vector.broadcast %cst_20 : f32 to vector<32x32xf32>
    %90 = arith.mulf %88, %89 : vector<32x32xf32>
    %cst_21 = arith.constant -1.000000e+30 : f32
    %91 = vector.shape_cast %72 : vector<1x32xi1> to vector<1x32xi1>
    %92 = vector.broadcast %91 : vector<1x32xi1> to vector<32x32xi1>
    %93 = vector.broadcast %cst_21 : f32 to vector<32x32xf32>
    %94 = arith.select %92, %90, %93 : vector<32x32xi1>, vector<32x32xf32>
    %95 = tpu.concatenate %73, %94 in 1 : vector<32x32xf32>, vector<32x32xf32> -> vector<32x64xf32>
    %96 = tpu.concatenate %84, %95 in 0 : vector<32x64xf32>, vector<32x64xf32> -> vector<64x64xf32>
    %cst_22 = arith.constant dense<0xFF800000> : vector<64xf32>
    %97 = vector.multi_reduction <maximumf>, %96, %cst_22 [1] : vector<64x64xf32> to vector<64xf32>
    %98 = vector.shape_cast %97 : vector<64xf32> to vector<64x1xf32>
    %99 = vector.broadcast %98 : vector<64x1xf32> to vector<64x64xf32>
    %100 = arith.subf %96, %99 : vector<64x64xf32>
    %101 = math.exp %100 : vector<64x64xf32>
    %cst_23 = arith.constant dense<0.000000e+00> : vector<64xf32>
    %102 = vector.multi_reduction <add>, %101, %cst_23 [1] : vector<64x64xf32> to vector<64xf32>
    %103 = vector.shape_cast %102 : vector<64xf32> to vector<64x1xf32>
    %104 = tpu.reciprocal %103 : vector<64x1xf32> -> vector<64x1xf32>
    %105 = vector.broadcast %104 : vector<64x1xf32> to vector<64x64xf32>
    %106 = arith.mulf %101, %105 : vector<64x64xf32>
    %cst_24 = arith.constant dense<0.000000e+00> : vector<64x32xf32>
    %107 = tpu.matmul %106, %51, %cst_24 {dimension_numbers = #tpu.dot_dimension_numbers<[1], [0], [0], [1], [0, 0, 1, 1], [], []>} : vector<64x64xf32>, vector<64x32xf32>, vector<64x32xf32> -> vector<64x32xf32>
    %cst_25 = arith.constant dense<0.000000e+00> : vector<64x32xf32>
    %108 = tpu.matmul %107, %13, %cst_25 {dimension_numbers = #tpu.dot_dimension_numbers<[1], [0], [0], [1], [0, 0, 1, 1], [], []>} : vector<64x32xf32>, vector<32x32xf32>, vector<64x32xf32> -> vector<64x32xf32>
    %109 = vector.broadcast %5 : vector<1x32xf32> to vector<64x32xf32>
    %110 = arith.addf %108, %109 : vector<64x32xf32>
    %111 = arith.addf %110, %0 : vector<64x32xf32>
    %112 = vector.broadcast %21 : vector<64x1xf32> to vector<64x32xf32>
    %113 = arith.mulf %111, %112 : vector<64x32xf32>
    %cst_26 = arith.constant dense<0.000000e+00> : vector<32xf32>
    %114 = vector.multi_reduction <add>, %113, %cst_26 [0] : vector<64x32xf32> to vector<32xf32>
    %115 = vector.shape_cast %114 : vector<32xf32> to vector<1x32xf32>
    %cst_27 = arith.constant 0.0161290318 : f32
    %116 = vector.broadcast %cst_27 : f32 to vector<1x32xf32>
    %117 = arith.mulf %115, %116 : vector<1x32xf32>
    %118 = arith.mulf %113, %111 : vector<64x32xf32>
    %cst_28 = arith.constant dense<0.000000e+00> : vector<32xf32>
    %119 = vector.multi_reduction <add>, %118, %cst_28 [0] : vector<64x32xf32> to vector<32xf32>
    %120 = vector.shape_cast %119 : vector<32xf32> to vector<1x32xf32>
    %cst_29 = arith.constant 0.0161290318 : f32
    %121 = vector.broadcast %cst_29 : f32 to vector<1x32xf32>
    %122 = arith.mulf %120, %121 : vector<1x32xf32>
    %123 = arith.mulf %117, %117 : vector<1x32xf32>
    %124 = arith.subf %122, %123 : vector<1x32xf32>
    %cst_30 = arith.constant 0.000000e+00 : f32
    %125 = vector.broadcast %cst_30 : f32 to vector<1x32xf32>
    %126 = arith.maximumf %124, %125 : vector<1x32xf32>
    %127 = vector.broadcast %117 : vector<1x32xf32> to vector<64x32xf32>
    %128 = arith.subf %111, %127 : vector<64x32xf32>
    %cst_31 = arith.constant 9.99999974E-6 : f32
    %129 = vector.broadcast %cst_31 : f32 to vector<1x32xf32>
    %130 = arith.addf %126, %129 : vector<1x32xf32>
    %131 = math.rsqrt %130 : vector<1x32xf32>
    %132 = vector.broadcast %131 : vector<1x32xf32> to vector<64x32xf32>
    %133 = arith.mulf %128, %132 : vector<64x32xf32>
    %134 = vector.broadcast %6 : vector<1x32xf32> to vector<64x32xf32>
    %135 = arith.mulf %133, %134 : vector<64x32xf32>
    %136 = vector.broadcast %7 : vector<1x32xf32> to vector<64x32xf32>
    %137 = arith.addf %135, %136 : vector<64x32xf32>
    %cst_32 = arith.constant 0.000000e+00 : f32
    %138 = vector.broadcast %cst_32 : f32 to vector<64x32xf32>
    %139 = arith.maximumf %137, %138 : vector<64x32xf32>
    %cst_33 = arith.constant dense<0.000000e+00> : vector<64x64xf32>
    %140 = tpu.matmul %139, %14, %cst_33 {dimension_numbers = #tpu.dot_dimension_numbers<[1], [0], [0], [1], [0, 0, 1, 1], [], []>} : vector<64x32xf32>, vector<32x64xf32>, vector<64x64xf32> -> vector<64x64xf32>
    %141 = vector.broadcast %21 : vector<64x1xf32> to vector<64x64xf32>
    %142 = arith.mulf %140, %141 : vector<64x64xf32>
    %cst_34 = arith.constant dense<0.000000e+00> : vector<64xf32>
    %143 = vector.multi_reduction <add>, %142, %cst_34 [0] : vector<64x64xf32> to vector<64xf32>
    %144 = vector.shape_cast %143 : vector<64xf32> to vector<1x64xf32>
    %cst_35 = arith.constant 0.0161290318 : f32
    %145 = vector.broadcast %cst_35 : f32 to vector<1x64xf32>
    %146 = arith.mulf %144, %145 : vector<1x64xf32>
    %147 = arith.mulf %142, %140 : vector<64x64xf32>
    %cst_36 = arith.constant dense<0.000000e+00> : vector<64xf32>
    %148 = vector.multi_reduction <add>, %147, %cst_36 [0] : vector<64x64xf32> to vector<64xf32>
    %149 = vector.shape_cast %148 : vector<64xf32> to vector<1x64xf32>
    %cst_37 = arith.constant 0.0161290318 : f32
    %150 = vector.broadcast %cst_37 : f32 to vector<1x64xf32>
    %151 = arith.mulf %149, %150 : vector<1x64xf32>
    %152 = arith.mulf %146, %146 : vector<1x64xf32>
    %153 = arith.subf %151, %152 : vector<1x64xf32>
    %cst_38 = arith.constant 0.000000e+00 : f32
    %154 = vector.broadcast %cst_38 : f32 to vector<1x64xf32>
    %155 = arith.maximumf %153, %154 : vector<1x64xf32>
    %156 = vector.broadcast %146 : vector<1x64xf32> to vector<64x64xf32>
    %157 = arith.subf %140, %156 : vector<64x64xf32>
    %cst_39 = arith.constant 9.99999974E-6 : f32
    %158 = vector.broadcast %cst_39 : f32 to vector<1x64xf32>
    %159 = arith.addf %155, %158 : vector<1x64xf32>
    %160 = math.rsqrt %159 : vector<1x64xf32>
    %161 = vector.broadcast %160 : vector<1x64xf32> to vector<64x64xf32>
    %162 = arith.mulf %157, %161 : vector<64x64xf32>
    %163 = vector.broadcast %8 : vector<1x64xf32> to vector<64x64xf32>
    %164 = arith.mulf %162, %163 : vector<64x64xf32>
    %165 = vector.broadcast %9 : vector<1x64xf32> to vector<64x64xf32>
    %166 = arith.addf %164, %165 : vector<64x64xf32>
    %cst_40 = arith.constant 0.000000e+00 : f32
    %167 = vector.broadcast %cst_40 : f32 to vector<64x64xf32>
    %168 = arith.maximumf %166, %167 : vector<64x64xf32>
    %c0_41 = arith.constant 0 : index
    %c0_42 = arith.constant 0 : index
    %169 = vector.load %arg2[%c0_41, %c0_42] : memref<64x32xf32, #tpu.memory_space<vmem>>, vector<64x32xf32>
    %cst_43 = arith.constant dense<0.000000e+00> : vector<64x32xf32>
    %170 = tpu.matmul %168, %169, %cst_43 {dimension_numbers = #tpu.dot_dimension_numbers<[1], [0], [0], [1], [0, 0, 1, 1], [], []>} : vector<64x64xf32>, vector<64x32xf32>, vector<64x32xf32> -> vector<64x32xf32>
    %171 = arith.addf %111, %170 : vector<64x32xf32>
    %c0_44 = arith.constant 0 : index
    %c0_45 = arith.constant 0 : index
    %172 = vector.load %arg4[%c0_44, %c0_45] : memref<64x32xf32, #tpu.memory_space<vmem>>, vector<64x32xf32>
    tpu.vector_store %arg4[%c0_44, %c0_45], %171 {strides = array<i32>} : memref<64x32xf32, #tpu.memory_space<vmem>>, vector<64x32xf32>,
    return
  }
}

</mosaic_0001>

<llo_original>
// kernel: tpu_custom_call.1
$region0: #{tpu_custom_call.1}
  #allocation0 [shape = 'u32[]', space=smem, size = 0x4, offset = 0x4, fixed_abs, tag = 'smem constant byte address 0x4 - core index']
  #allocation1 [shape = 'u32[72,128]{1,0:T(1,128)}', space=vmem, size = 0x9000, scoped, tag = 'internal scratch']
  %s0 = inlined_call_operand.vmem [shape: f32[64,32], index: 0, kind: input, shape index: {}]
  %s1 = inlined_call_operand.vmem [shape: f32[32,192], index: 1, kind: input, shape index: {}]
  %s2 = inlined_call_operand.vmem [shape: f32[64,32], index: 2, kind: input, shape index: {}]
  %s3 = inlined_call_operand.vmem [shape: f32[72,64], index: 3, kind: input, shape index: {}]
  %s4 = inlined_call_operand.vmem [shape: f32[64,32], index: 4, kind: output, shape index: {}]
  %s5 = sld [smem:[#allocation0]]
  $region26: #{tpu_custom_call.1} parent=0
    _
  %s7 = ssub.s32 1, %s5
  %s8 = scalar_select 0, %s7, %s5
  // Predicated region
  $region2: #{tpu_custom_call.1} parent=0 // pred_check
    _
  $region3: #{tpu_custom_call.1} parent=0 // pred_check_branch
    %10 = sbr.rel (0) target = $region5
  $region4: #{tpu_custom_call.1} parent=0 // pred_region
    _
  $region5: #{tpu_custom_call.1} parent=0 // pred_fallthru
    _
  // Predicated region
  $region6: #{tpu_custom_call.1} parent=0 // pred_check
    _
  $region7: #{tpu_custom_call.1} parent=0 // pred_check_branch
    %12 = sbr.rel (0) target = $region9
  $region8: #{tpu_custom_call.1} parent=0 // pred_region
    _
  $region9: #{tpu_custom_call.1} parent=0 // pred_fallthru
    _
  // Predicated region
  $region10: #{tpu_custom_call.1} parent=0 // pred_check
    _
  $region11: #{tpu_custom_call.1} parent=0 // pred_check_branch
    %14 = sbr.rel (0) target = $region13
  $region12: #{tpu_custom_call.1} parent=0 // pred_region
    _
  $region13: #{tpu_custom_call.1} parent=0 // pred_fallthru
    _
  // Predicated region
  $region14: #{tpu_custom_call.1} parent=0 // pred_check
    _
  $region15: #{tpu_custom_call.1} parent=0 // pred_check_branch
    %16 = sbr.rel (0) target = $region17
  $region16: #{tpu_custom_call.1} parent=0 // pred_region
    _
  $region17: #{tpu_custom_call.1} parent=0 // pred_fallthru
    _
  %v17 = vld [vmem:[%s0] sm:$0xff]
  %v18 = vld [vmem:[%s0 + $0x8] sm:$0xff]
  %v19 = vld [vmem:[%s0 + $0x10] sm:$0xff]
  %v20 = vld [vmem:[%s0 + $0x18] sm:$0xff]
  %v21 = vld [vmem:[%s0 + $0x20] sm:$0xff]
  %v22 = vld [vmem:[%s0 + $0x28] sm:$0xff]
  %v23 = vld [vmem:[%s0 + $0x30] sm:$0xff]
  %v24 = vld [vmem:[%s0 + $0x38] sm:$0xff]
  %v25 = vld [vmem:[%s1] sm:$0xff]
  %v26 = vld [vmem:[%s1 + $0x8] sm:$0xff]
  %v27 = vld [vmem:[%s1 + $0x10] sm:$0xff]
  %v28 = vld [vmem:[%s1 + $0x18] sm:$0xff]
  %v29 = vld [vmem:[%s1 + $0x20] sm:$0xff]
  %v30 = vld [vmem:[%s1 + $0x28] sm:$0xff]
  %v31 = vld [vmem:[%s1 + $0x30] sm:$0xff]
  %v32 = vld [vmem:[%s1 + $0x38] sm:$0xff]
  %v33 = vld [vmem:[%s3] sm:$0xff]
  %v34 = vld [vmem:[%s3 + $0x8] sm:$0xff]
  %v35 = vld [vmem:[%s3 + $0x10] sm:$0xff]
  %v36 = vld [vmem:[%s3 + $0x18] sm:$0xff]
  %v37 = vld [vmem:[%s3 + $0x20] sm:$0xff]
  %v38 = vld [vmem:[%s3 + $0x28] sm:$0xff]
  %v39 = vld [vmem:[%s3 + $0x30] sm:$0xff]
  %v40 = vld [vmem:[%s3 + $0x38] sm:$0xff]
  %v41 = vld [vmem:[%s3 + $0x40] sm:$0xff]
  %v42 = vlaneseq
  %v43 = vshrl.u32 %v42, 7
  %v44 = vadd.s32 %v43, 8
  %v45 = vadd.s32 %v43, 16
  %v46 = vadd.s32 %v43, 24
  %v47 = vadd.s32 %v43, 32
  %v48 = vadd.s32 %v43, 40
  %v49 = vadd.s32 %v43, 48
  %v50 = vadd.s32 %v43, 56
  %v51 = vand.u32 %v43, 31
  %v52 = vand.u32 %v44, 31
  %v53 = vand.u32 %v45, 31
  %v54 = vand.u32 %v46, 31
  %v55 = vand.u32 %v47, 31
  %v56 = vand.u32 %v48, 31
  %v57 = vand.u32 %v49, 31
  %v58 = vand.u32 %v50, 31
  %vm59 = vcmp.lt.s32.totalorder %v51, 31
  %vm60 = vcmp.lt.s32.totalorder %v52, 31
  %vm61 = vcmp.lt.s32.totalorder %v53, 31
  %vm62 = vcmp.lt.s32.totalorder %v54, 31
  %vm63 = vcmp.lt.s32.totalorder %v55, 31
  %vm64 = vcmp.lt.s32.totalorder %v56, 31
  %vm65 = vcmp.lt.s32.totalorder %v57, 31
  %vm66 = vcmp.lt.s32.totalorder %v58, 31
  %v67 = vsel %vm59, 1, 0
  %v68 = vsel %vm60, 1, 0
  %v69 = vsel %vm61, 1, 0
  %v70 = vsel %vm62, 1, 0
  %v71 = vsel %vm63, 1, 0
  %v72 = vsel %vm64, 1, 0
  %v73 = vsel %vm65, 1, 0
  %v74 = vsel %vm66, 1, 0
  %v75 = vcvt.s32.f32 %v67
  %v76 = vcvt.s32.f32 %v68
  %v77 = vcvt.s32.f32 %v69
  %v78 = vcvt.s32.f32 %v70
  %v79 = vcvt.s32.f32 %v71
  %v80 = vcvt.s32.f32 %v72
  %v81 = vcvt.s32.f32 %v73
  %v82 = vcvt.s32.f32 %v74
  %v83 = vmul.f32 %v17, %v75
  %v84 = vmul.f32 %v18, %v76
  %v85 = vmul.f32 %v19, %v77
  %v86 = vmul.f32 %v20, %v78
  %v87 = vmul.f32 %v21, %v79
  %v88 = vmul.f32 %v22, %v80
  %v89 = vmul.f32 %v23, %v81
  %v90 = vmul.f32 %v24, %v82
  %vm91 = vcmask 261120
  %v92 = vsel %vm91, %v83, 0.0
  %v93 = vsel %vm91, %v84, 0.0
  %v94 = vadd.f32 %v92, %v93
  %v95 = vsel %vm91, %v85, 0.0
  %v96 = vadd.f32 %v94, %v95
  %v97 = vsel %vm91, %v86, 0.0
  %v98 = vadd.f32 %v96, %v97
  %v99 = vsel %vm91, %v87, 0.0
  %v100 = vadd.f32 %v98, %v99
  %v101 = vsel %vm91, %v88, 0.0
  %v102 = vadd.f32 %v100, %v101
  %v103 = vsel %vm91, %v89, 0.0
  %v104 = vadd.f32 %v102, %v103
  %v105 = vsel %vm91, %v90, 0.0
  %v106 = vadd.f32 %v104, %v105
  %v107 = vrot.slane %v106, 4
  %v108 = vadd.f32 %v106, %v107
  %v109 = vrot.slane %v108, 2
  %v110 = vadd.f32 %v108, %v109
  %v111 = vrot.slane %v110, 1
  %v112 = vadd.f32 %v110, %v111
  %v113 = vmul.f32 %v112, 0.016129032
  %v114 = vmul.f32 %v83, %v17
  %v115 = vmul.f32 %v84, %v18
  %v116 = vmul.f32 %v85, %v19
  %v117 = vmul.f32 %v86, %v20
  %v118 = vmul.f32 %v87, %v21
  %v119 = vmul.f32 %v88, %v22
  %v120 = vmul.f32 %v89, %v23
  %v121 = vmul.f32 %v90, %v24
  %v122 = vsel %vm91, %v114, 0.0
  %v123 = vsel %vm91, %v115, 0.0
  %v124 = vadd.f32 %v122, %v123
  %v125 = vsel %vm91, %v116, 0.0
  %v126 = vadd.f32 %v124, %v125
  %v127 = vsel %vm91, %v117, 0.0
  %v128 = vadd.f32 %v126, %v127
  %v129 = vsel %vm91, %v118, 0.0
  %v130 = vadd.f32 %v128, %v129
  %v131 = vsel %vm91, %v119, 0.0
  %v132 = vadd.f32 %v130, %v131
  %v133 = vsel %vm91, %v120, 0.0
  %v134 = vadd.f32 %v132, %v133
  %v135 = vsel %vm91, %v121, 0.0
  %v136 = vadd.f32 %v134, %v135
  %v137 = vrot.slane %v136, 4
  %v138 = vadd.f32 %v136, %v137
  %v139 = vrot.slane %v138, 2
  %v140 = vadd.f32 %v138, %v139
  %v141 = vrot.slane %v140, 1
  %v142 = vadd.f32 %v140, %v141
  %v143 = vmul.f32 %v142, 0.016129032
  %v144 = vmul.f32 %v113, %v113
  %v145 = vsub.f32 %v143, %v144
  %v146 = vmax.f32 %v145, 0.0
  %v147 = vsub.f32 %v17, %v113
  %v148 = vsub.f32 %v18, %v113
  %v149 = vsub.f32 %v19, %v113
  %v150 = vsub.f32 %v20, %v113
  %v151 = vsub.f32 %v21, %v113
  %v152 = vsub.f32 %v22, %v113
  %v153 = vsub.f32 %v23, %v113
  %v154 = vsub.f32 %v24, %v113
  %v155 = vadd.f32 %v146, 1e-05
  %v156 = vrsqrt.pop %v155
  %v157 = vmul.f32 %v156, %v155
  %v158 = vmul.f32 %v157, %v156
  %v159 = vmul.f32 0.5, %v158
  %v160 = vsub.f32 1.5, %v159
  %v161 = vmul.f32 %v156, %v160
  %vm162 = vweird.f32 %v155
  %vm163 = vweird.f32 %v156
  %vm164 = vmor %vm162, %vm163
  %v165 = vsel %vm164, %v156, %v161
  %v166 = vmul.f32 %v147, %v165
  %v167 = vmul.f32 %v148, %v165
  %v168 = vmul.f32 %v149, %v165
  %v169 = vmul.f32 %v150, %v165
  %v170 = vmul.f32 %v151, %v165
  %v171 = vmul.f32 %v152, %v165
  %v172 = vmul.f32 %v153, %v165
  %v173 = vmul.f32 %v154, %v165
  %v174 = vperm.slane %v33, 0
  %v175 = vmul.f32 %v166, %v174
  %v176 = vmul.f32 %v167, %v174
  %v177 = vmul.f32 %v168, %v174
  %v178 = vmul.f32 %v169, %v174
  %v179 = vmul.f32 %v170, %v174
  %v180 = vmul.f32 %v171, %v174
  %v181 = vmul.f32 %v172, %v174
  %v182 = vmul.f32 %v173, %v174
  %v183 = vperm.slane %v33, 1
  %v184 = vadd.f32 %v175, %v183
  %v185 = vadd.f32 %v176, %v183
  %v186 = vadd.f32 %v177, %v183
  %v187 = vadd.f32 %v178, %v183
  %v188 = vadd.f32 %v179, %v183
  %v189 = vadd.f32 %v180, %v183
  %v190 = vadd.f32 %v181, %v183
  %v191 = vadd.f32 %v182, %v183
  %v193 = vsel %vm91, %v184, 0
  %v196 = vsel %vm91, %v185, 0
  %v199 = vsel %vm91, %v186, 0
  %v202 = vsel %vm91, %v187, 0
  %v205 = vsel %vm91, %v188, 0
  %v208 = vsel %vm91, %v189, 0
  %v211 = vsel %vm91, %v190, 0
  %v214 = vsel %vm91, %v191, 0
  %216 = vmatpush.msra.mxu0 0.0
  %217 = vmatpush.msra.mxu0 0.0
  %218 = vmatpush.msra.mxu0 0.0
  %219 = vmatpush.msra.mxu0 0.0
  %220 = vmatpush.msra.mxu0 0.0
  %221 = vmatpush.msra.mxu0 0.0
  %222 = vmatpush.msra.mxu0 0.0
  %223 = vmatpush.msra.mxu0 0.0
  %224 = vmatpush.msra.mxu0 0.0
  %225 = vmatpush.msra.mxu0 0.0
  %226 = vmatpush.msra.mxu0 0.0
  %227 = vmatpush.msra.mxu0 0.0
  %228 = vmatpush.msra.mxu0 %v31
  %229 = vmatpush.msra.mxu0 %v29
  %230 = vmatpush.msra.mxu0 %v27
  %231 = vmatpush.msra.mxu0 %v25
  %232 = vmatmul.f32.gmra.mxu0 %v193
  %v233 = vpop.f32.mrf.mxu0
  %v234 = vadd.f32 0.0, %v233
  %235 = vmatmul.f32.gmra.mxu0 %v196
  %v236 = vpop.f32.mrf.mxu0
  %v237 = vadd.f32 0.0, %v236
  %238 = vmatmul.f32.gmra.mxu0 %v199
  %v239 = vpop.f32.mrf.mxu0
  %v240 = vadd.f32 0.0, %v239
  %241 = vmatmul.f32.gmra.mxu0 %v202
  %v242 = vpop.f32.mrf.mxu0
  %v243 = vadd.f32 0.0, %v242
  %244 = vmatmul.f32.gmra.mxu0 %v205
  %v245 = vpop.f32.mrf.mxu0
  %v246 = vadd.f32 0.0, %v245
  %247 = vmatmul.f32.gmra.mxu0 %v208
  %v248 = vpop.f32.mrf.mxu0
  %v249 = vadd.f32 0.0, %v248
  %250 = vmatmul.f32.gmra.mxu0 %v211
  %v251 = vpop.f32.mrf.mxu0
  %v252 = vadd.f32 0.0, %v251
  %253 = vmatmul.f32.gmra.mxu0 %v214
  %v254 = vpop.f32.mrf.mxu0
  %v255 = vadd.f32 0.0, %v254
  %256 = vdwg.mxu0
  %265 = vrot.lane.b32.xlu0 %v234, 96
  %v266 = vpop.permute.xlu0 %265
  %267 = vrot.lane.b32.xlu0 %v237, 96
  %v268 = vpop.permute.xlu0 %267
  %269 = vrot.lane.b32.xlu0 %v240, 96
  %v270 = vpop.permute.xlu0 %269
  %271 = vrot.lane.b32.xlu0 %v243, 96
  %v272 = vpop.permute.xlu0 %271
  %273 = vrot.lane.b32.xlu0 %v246, 96
  %v274 = vpop.permute.xlu0 %273
  %275 = vrot.lane.b32.xlu0 %v249, 96
  %v276 = vpop.permute.xlu0 %275
  %277 = vrot.lane.b32.xlu0 %v252, 96
  %v278 = vpop.permute.xlu0 %277
  %279 = vrot.lane.b32.xlu0 %v255, 96
  %v280 = vpop.permute.xlu0 %279
  %v281 = vsel %vm91, %v234, 0
  %v283 = vsel %vm91, %v237, 0
  %v285 = vsel %vm91, %v240, 0
  %v287 = vsel %vm91, %v243, 0
  %v289 = vsel %vm91, %v246, 0
  %v291 = vsel %vm91, %v249, 0
  %v293 = vsel %vm91, %v252, 0
  %v295 = vsel %vm91, %v255, 0
  %v297 = vsel %vm91, %v266, 0
  %v299 = vsel %vm91, %v268, 0
  %v301 = vsel %vm91, %v270, 0
  %v303 = vsel %vm91, %v272, 0
  %v305 = vsel %vm91, %v274, 0
  %v307 = vsel %vm91, %v276, 0
  %v309 = vsel %vm91, %v278, 0
  %v311 = vsel %vm91, %v280, 0
  %313 = vmatpush.xpose.msra.mxu0 0.0
  %314 = vmatpush.xpose.msra.mxu0 0.0
  %315 = vmatpush.xpose.msra.mxu0 0.0
  %316 = vmatpush.xpose.msra.mxu0 0.0
  %317 = vmatpush.xpose.msra.mxu0 0.0
  %318 = vmatpush.xpose.msra.mxu0 0.0
  %319 = vmatpush.xpose.msra.mxu0 0.0
  %320 = vmatpush.xpose.msra.mxu0 0.0
  %321 = vmatpush.xpose.msra.mxu0 %v311
  %322 = vmatpush.xpose.msra.mxu0 %v309
  %323 = vmatpush.xpose.msra.mxu0 %v307
  %324 = vmatpush.xpose.msra.mxu0 %v305
  %325 = vmatpush.xpose.msra.mxu0 %v303
  %326 = vmatpush.xpose.msra.mxu0 %v301
  %327 = vmatpush.xpose.msra.mxu0 %v299
  %328 = vmatpush.xpose.msra.mxu0 %v297
  %329 = vmatmul.f32.gmra.mxu0 %v281
  %v330 = vpop.f32.mrf.mxu0
  %v331 = vadd.f32 0.0, %v330
  %332 = vmatmul.f32.gmra.mxu0 %v283
  %v333 = vpop.f32.mrf.mxu0
  %v334 = vadd.f32 0.0, %v333
  %335 = vmatmul.f32.gmra.mxu0 %v285
  %v336 = vpop.f32.mrf.mxu0
  %v337 = vadd.f32 0.0, %v336
  %338 = vmatmul.f32.gmra.mxu0 %v287
  %v339 = vpop.f32.mrf.mxu0
  %v340 = vadd.f32 0.0, %v339
  %341 = vmatmul.f32.gmra.mxu0 %v289
  %v342 = vpop.f32.mrf.mxu0
  %v343 = vadd.f32 0.0, %v342
  %344 = vmatmul.f32.gmra.mxu0 %v291
  %v345 = vpop.f32.mrf.mxu0
  %v346 = vadd.f32 0.0, %v345
  %347 = vmatmul.f32.gmra.mxu0 %v293
  %v348 = vpop.f32.mrf.mxu0
  %v349 = vadd.f32 0.0, %v348
  %350 = vmatmul.f32.gmra.mxu0 %v295
  %v351 = vpop.f32.mrf.mxu0
  %v352 = vadd.f32 0.0, %v351
  %353 = vdwg.mxu0
  %358 = vrot.lane.b32.xlu0 %v343, 96
  %v359 = vpop.permute.xlu0 %358
  %360 = vrot.lane.b32.xlu0 %v346, 96
  %v361 = vpop.permute.xlu0 %360
  %362 = vrot.lane.b32.xlu0 %v349, 96
  %v363 = vpop.permute.xlu0 %362
  %364 = vrot.lane.b32.xlu0 %v352, 96
  %v365 = vpop.permute.xlu0 %364
  %v370 = vadd.f32 %v331, %v359
  %v371 = vadd.f32 %v334, %v361
  %v372 = vadd.f32 %v337, %v363
  %v373 = vadd.f32 %v340, %v365
  %v374 = vmul.f32 %v370, 0.5
  %v375 = vmul.f32 %v371, 0.5
  %v376 = vmul.f32 %v372, 0.5
  %v377 = vmul.f32 %v373, 0.5
  %v378 = vsub.f32 %v331, %v374
  %v379 = vsub.f32 %v334, %v375
  %v380 = vsub.f32 %v337, %v376
  %v381 = vsub.f32 %v340, %v377
  %v382 = vmul.f32 %v378, %v378
  %v383 = vmul.f32 %v379, %v379
  %v384 = vmul.f32 %v380, %v380
  %v385 = vmul.f32 %v381, %v381
  %390 = vrot.lane.b32.xlu0 %v374, 32
  %v391 = vpop.permute.xlu0 %390
  %392 = vrot.lane.b32.xlu0 %v375, 32
  %v393 = vpop.permute.xlu0 %392
  %394 = vrot.lane.b32.xlu0 %v376, 32
  %v395 = vpop.permute.xlu0 %394
  %396 = vrot.lane.b32.xlu0 %v377, 32
  %v397 = vpop.permute.xlu0 %396
  %v402 = vsub.f32 %v343, %v391
  %v403 = vsub.f32 %v346, %v393
  %v404 = vsub.f32 %v349, %v395
  %v405 = vsub.f32 %v352, %v397
  %v406 = vmul.f32 %v402, %v402
  %v407 = vmul.f32 %v403, %v403
  %v408 = vmul.f32 %v404, %v404
  %v409 = vmul.f32 %v405, %v405
  %414 = vrot.lane.b32.xlu0 %v406, 96
  %v415 = vpop.permute.xlu0 %414
  %416 = vrot.lane.b32.xlu0 %v407, 96
  %v417 = vpop.permute.xlu0 %416
  %418 = vrot.lane.b32.xlu0 %v408, 96
  %v419 = vpop.permute.xlu0 %418
  %420 = vrot.lane.b32.xlu0 %v409, 96
  %v421 = vpop.permute.xlu0 %420
  %v426 = vadd.f32 %v382, %v415
  %v427 = vadd.f32 %v383, %v417
  %v428 = vadd.f32 %v384, %v419
  %v429 = vadd.f32 %v385, %v421
  %v430 = vmul.f32 %v426, 0.5
  %v431 = vmul.f32 %v427, 0.5
  %v432 = vmul.f32 %v428, 0.5
  %v433 = vmul.f32 %v429, 0.5
  %v434 = vadd.f32 %v430, 1e-05
  %v435 = vadd.f32 %v431, 1e-05
  %v436 = vadd.f32 %v432, 1e-05
  %v437 = vadd.f32 %v433, 1e-05
  %v438 = vrsqrt.pop %v434
  %v439 = vmul.f32 %v438, %v434
  %v440 = vmul.f32 %v439, %v438
  %v441 = vmul.f32 0.5, %v440
  %v442 = vsub.f32 1.5, %v441
  %v443 = vmul.f32 %v438, %v442
  %vm444 = vweird.f32 %v434
  %vm445 = vweird.f32 %v438
  %vm446 = vmor %vm444, %vm445
  %v447 = vsel %vm446, %v438, %v443
  %v448 = vrsqrt.pop %v435
  %v449 = vmul.f32 %v448, %v435
  %v450 = vmul.f32 %v449, %v448
  %v451 = vmul.f32 0.5, %v450
  %v452 = vsub.f32 1.5, %v451
  %v453 = vmul.f32 %v448, %v452
  %vm454 = vweird.f32 %v435
  %vm455 = vweird.f32 %v448
  %vm456 = vmor %vm454, %vm455
  %v457 = vsel %vm456, %v448, %v453
  %v458 = vrsqrt.pop %v436
  %v459 = vmul.f32 %v458, %v436
  %v460 = vmul.f32 %v459, %v458
  %v461 = vmul.f32 0.5, %v460
  %v462 = vsub.f32 1.5, %v461
  %v463 = vmul.f32 %v458, %v462
  %vm464 = vweird.f32 %v436
  %vm465 = vweird.f32 %v458
  %vm466 = vmor %vm464, %vm465
  %v467 = vsel %vm466, %v458, %v463
  %v468 = vrsqrt.pop %v437
  %v469 = vmul.f32 %v468, %v437
  %v470 = vmul.f32 %v469, %v468
  %v471 = vmul.f32 0.5, %v470
  %v472 = vsub.f32 1.5, %v471
  %v473 = vmul.f32 %v468, %v472
  %vm474 = vweird.f32 %v437
  %vm475 = vweird.f32 %v468
  %vm476 = vmor %vm474, %vm475
  %v477 = vsel %vm476, %v468, %v473
  %v478 = vlaneseq
  %v479 = vand.u32 %v478, 127
  %vm480 = vcmp.lt.s32.totalorder %v479, 31
  %v481 = vmul.f32 %v378, %v447
  %v482 = vmul.f32 %v379, %v457
  %v483 = vmul.f32 %v380, %v467
  %v484 = vmul.f32 %v381, %v477
  %v485 = vmul.f32 %v481, %v34
  %v486 = vmul.f32 %v482, %v35
  %v487 = vmul.f32 %v483, %v36
  %v488 = vmul.f32 %v484, %v37
  %v489 = vadd.f32 %v485, %v38
  %v490 = vadd.f32 %v486, %v39
  %v491 = vadd.f32 %v487, %v40
  %v492 = vadd.f32 %v488, %v41
  %v493 = vmul.f32 %v489, 0.17677669
  %v494 = vmul.f32 %v490, 0.17677669
  %v495 = vmul.f32 %v491, 0.17677669
  %v496 = vmul.f32 %v492, 0.17677669
  %v497 = vsel %vm480, 1, 0
  %vm498 = vcmp.eq.s32.totalorder %v497, 1
  %v499 = vsel %vm498, %v493, -1e+30
  %v500 = vsel %vm498, %v494, -1e+30
  %v501 = vsel %vm498, %v495, -1e+30
  %v502 = vsel %vm498, %v496, -1e+30
  %v503 = vsel %vm91, %v499, -1e+30
  %v504 = vsel %vm91, %v500, -1e+30
  %v505 = vsel %vm91, %v501, -1e+30
  %v506 = vsel %vm91, %v502, -1e+30
  %511 = vrot.lane.b32.xlu0 %v447, 32
  %v512 = vpop.permute.xlu0 %511
  %513 = vrot.lane.b32.xlu0 %v457, 32
  %v514 = vpop.permute.xlu0 %513
  %515 = vrot.lane.b32.xlu0 %v467, 32
  %v516 = vpop.permute.xlu0 %515
  %517 = vrot.lane.b32.xlu0 %v477, 32
  %v518 = vpop.permute.xlu0 %517
  %v523 = vmul.f32 %v402, %v512
  %v524 = vmul.f32 %v403, %v514
  %v525 = vmul.f32 %v404, %v516
  %v526 = vmul.f32 %v405, %v518
  %531 = vrot.lane.b32.xlu0 %v34, 32
  %v532 = vpop.permute.xlu0 %531
  %533 = vrot.lane.b32.xlu0 %v35, 32
  %v534 = vpop.permute.xlu0 %533
  %535 = vrot.lane.b32.xlu0 %v36, 32
  %v536 = vpop.permute.xlu0 %535
  %537 = vrot.lane.b32.xlu0 %v37, 32
  %v538 = vpop.permute.xlu0 %537
  %v543 = vmul.f32 %v523, %v532
  %v544 = vmul.f32 %v524, %v534
  %v545 = vmul.f32 %v525, %v536
  %v546 = vmul.f32 %v526, %v538
  %551 = vrot.lane.b32.xlu0 %v38, 32
  %v552 = vpop.permute.xlu0 %551
  %553 = vrot.lane.b32.xlu0 %v39, 32
  %v554 = vpop.permute.xlu0 %553
  %555 = vrot.lane.b32.xlu0 %v40, 32
  %v556 = vpop.permute.xlu0 %555
  %557 = vrot.lane.b32.xlu0 %v41, 32
  %v558 = vpop.permute.xlu0 %557
  %v563 = vadd.f32 %v543, %v552
  %v564 = vadd.f32 %v544, %v554
  %v565 = vadd.f32 %v545, %v556
  %v566 = vadd.f32 %v546, %v558
  %v567 = vmul.f32 %v563, 0.17677669
  %v568 = vmul.f32 %v564, 0.17677669
  %v569 = vmul.f32 %v565, 0.17677669
  %v570 = vmul.f32 %v566, 0.17677669
  %575 = vrot.lane.b32.xlu0 %v567, 96
  %v576 = vpop.permute.xlu0 %575
  %577 = vrot.lane.b32.xlu0 %v568, 96
  %v578 = vpop.permute.xlu0 %577
  %579 = vrot.lane.b32.xlu0 %v569, 96
  %v580 = vpop.permute.xlu0 %579
  %581 = vrot.lane.b32.xlu0 %v570, 96
  %v582 = vpop.permute.xlu0 %581
  %v587 = vsel %vm498, %v576, -1e+30
  %v588 = vsel %vm498, %v578, -1e+30
  %v589 = vsel %vm498, %v580, -1e+30
  %v590 = vsel %vm498, %v582, -1e+30
  %595 = vrot.lane.b32.xlu0 %v587, 32
  %v596 = vpop.permute.xlu0 %595
  %597 = vrot.lane.b32.xlu0 %v588, 32
  %v598 = vpop.permute.xlu0 %597
  %599 = vrot.lane.b32.xlu0 %v589, 32
  %v600 = vpop.permute.xlu0 %599
  %601 = vrot.lane.b32.xlu0 %v590, 32
  %v602 = vpop.permute.xlu0 %601
  %v607 = vsel %vm91, -1e+30, %v596
  %v608 = vsel %vm91, -1e+30, %v598
  %v609 = vsel %vm91, -1e+30, %v600
  %v610 = vsel %vm91, -1e+30, %v602
  %vm611 = vcmask 523264
  %v612 = vsel %vm611, %v503, -inf
  %613 = vmax.xlane.f32.xlu0 %v612
  %v614 = vpop.xlane.xlu0 %613
  %v615 = vsel %vm611, %v504, -inf
  %616 = vmax.xlane.f32.xlu0 %v615
  %v617 = vpop.xlane.xlu0 %616
  %v618 = vsel %vm611, %v505, -inf
  %619 = vmax.xlane.f32.xlu0 %v618
  %v620 = vpop.xlane.xlu0 %619
  %v621 = vsel %vm611, %v506, -inf
  %622 = vmax.xlane.f32.xlu0 %v621
  %v623 = vpop.xlane.xlu0 %622
  %v624 = vsel %vm611, %v607, -inf
  %625 = vmax.xlane.f32.xlu0 %v624
  %v626 = vpop.xlane.xlu0 %625
  %v627 = vsel %vm611, %v608, -inf
  %628 = vmax.xlane.f32.xlu0 %v627
  %v629 = vpop.xlane.xlu0 %628
  %v630 = vsel %vm611, %v609, -inf
  %631 = vmax.xlane.f32.xlu0 %v630
  %v632 = vpop.xlane.xlu0 %631
  %v633 = vsel %vm611, %v610, -inf
  %634 = vmax.xlane.f32.xlu0 %v633
  %v635 = vpop.xlane.xlu0 %634
  %v636 = vsub.f32 %v503, %v614
  %v637 = vsub.f32 %v504, %v617
  %v638 = vsub.f32 %v505, %v620
  %v639 = vsub.f32 %v506, %v623
  %v640 = vsub.f32 %v607, %v626
  %v641 = vsub.f32 %v608, %v629
  %v642 = vsub.f32 %v609, %v632
  %v643 = vsub.f32 %v610, %v635
  %v644 = vmul.f32 %v636, 1.442695
  %v645 = vpow.pop %v644
  %v646 = vmul.f32 %v637, 1.442695
  %v647 = vpow.pop %v646
  %v648 = vmul.f32 %v638, 1.442695
  %v649 = vpow.pop %v648
  %v650 = vmul.f32 %v639, 1.442695
  %v651 = vpow.pop %v650
  %v652 = vmul.f32 %v640, 1.442695
  %v653 = vpow.pop %v652
  %v654 = vmul.f32 %v641, 1.442695
  %v655 = vpow.pop %v654
  %v656 = vmul.f32 %v642, 1.442695
  %v657 = vpow.pop %v656
  %v658 = vmul.f32 %v643, 1.442695
  %v659 = vpow.pop %v658
  %v660 = vsel %vm611, %v645, 0.0
  %661 = vadd.xlane.f32.xlu0 %v660
  %v662 = vpop.xlane.xlu0 %661
  %v663 = vsel %vm611, %v647, 0.0
  %664 = vadd.xlane.f32.xlu0 %v663
  %v665 = vpop.xlane.xlu0 %664
  %v666 = vsel %vm611, %v649, 0.0
  %667 = vadd.xlane.f32.xlu0 %v666
  %v668 = vpop.xlane.xlu0 %667
  %v669 = vsel %vm611, %v651, 0.0
  %670 = vadd.xlane.f32.xlu0 %v669
  %v671 = vpop.xlane.xlu0 %670
  %v672 = vsel %vm611, %v653, 0.0
  %673 = vadd.xlane.f32.xlu0 %v672
  %v674 = vpop.xlane.xlu0 %673
  %v675 = vsel %vm611, %v655, 0.0
  %676 = vadd.xlane.f32.xlu0 %v675
  %v677 = vpop.xlane.xlu0 %676
  %v678 = vsel %vm611, %v657, 0.0
  %679 = vadd.xlane.f32.xlu0 %v678
  %v680 = vpop.xlane.xlu0 %679
  %v681 = vsel %vm611, %v659, 0.0
  %682 = vadd.xlane.f32.xlu0 %v681
  %v683 = vpop.xlane.xlu0 %682
  %v684 = vrcp.pop %v662
  %v685 = vmul.f32 %v662, %v684
  %v686 = vsub.f32 1.0, %v685
  %v687 = vmul.f32 %v684, %v686
  %v688 = vadd.f32 %v684, %v687
  %vm689 = vweird.f32 %v662
  %vm690 = vweird.f32 %v684
  %vm691 = vmor %vm689, %vm690
  %v692 = vsel %vm691, %v684, %v688
  %v693 = vand.u32 2147483647, %v662
  %vm694 = vcmp.eq.f32.partialorder %v693, 8.507059e+37
  %v695 = vand.u32 %v662, 2147483648
  %v696 = vor.u32 1.1754944e-38, %v695
  %v697 = vsel %vm694, %v696, %v692
  %v698 = vrcp.pop %v665
  %v699 = vmul.f32 %v665, %v698
  %v700 = vsub.f32 1.0, %v699
  %v701 = vmul.f32 %v698, %v700
  %v702 = vadd.f32 %v698, %v701
  %vm703 = vweird.f32 %v665
  %vm704 = vweird.f32 %v698
  %vm705 = vmor %vm703, %vm704
  %v706 = vsel %vm705, %v698, %v702
  %v707 = vand.u32 2147483647, %v665
  %vm708 = vcmp.eq.f32.partialorder %v707, 8.507059e+37
  %v709 = vand.u32 %v665, 2147483648
  %v710 = vor.u32 1.1754944e-38, %v709
  %v711 = vsel %vm708, %v710, %v706
  %v712 = vrcp.pop %v668
  %v713 = vmul.f32 %v668, %v712
  %v714 = vsub.f32 1.0, %v713
  %v715 = vmul.f32 %v712, %v714
  %v716 = vadd.f32 %v712, %v715
  %vm717 = vweird.f32 %v668
  %vm718 = vweird.f32 %v712
  %vm719 = vmor %vm717, %vm718
  %v720 = vsel %vm719, %v712, %v716
  %v721 = vand.u32 2147483647, %v668
  %vm722 = vcmp.eq.f32.partialorder %v721, 8.507059e+37
  %v723 = vand.u32 %v668, 2147483648
  %v724 = vor.u32 1.1754944e-38, %v723
  %v725 = vsel %vm722, %v724, %v720
  %v726 = vrcp.pop %v671
  %v727 = vmul.f32 %v671, %v726
  %v728 = vsub.f32 1.0, %v727
  %v729 = vmul.f32 %v726, %v728
  %v730 = vadd.f32 %v726, %v729
  %vm731 = vweird.f32 %v671
  %vm732 = vweird.f32 %v726
  %vm733 = vmor %vm731, %vm732
  %v734 = vsel %vm733, %v726, %v730
  %v735 = vand.u32 2147483647, %v671
  %vm736 = vcmp.eq.f32.partialorder %v735, 8.507059e+37
  %v737 = vand.u32 %v671, 2147483648
  %v738 = vor.u32 1.1754944e-38, %v737
  %v739 = vsel %vm736, %v738, %v734
  %v740 = vrcp.pop %v674
  %v741 = vmul.f32 %v674, %v740
  %v742 = vsub.f32 1.0, %v741
  %v743 = vmul.f32 %v740, %v742
  %v744 = vadd.f32 %v740, %v743
  %vm745 = vweird.f32 %v674
  %vm746 = vweird.f32 %v740
  %vm747 = vmor %vm745, %vm746
  %v748 = vsel %vm747, %v740, %v744
  %v749 = vand.u32 2147483647, %v674
  %vm750 = vcmp.eq.f32.partialorder %v749, 8.507059e+37
  %v751 = vand.u32 %v674, 2147483648
  %v752 = vor.u32 1.1754944e-38, %v751
  %v753 = vsel %vm750, %v752, %v748
  %v754 = vrcp.pop %v677
  %v755 = vmul.f32 %v677, %v754
  %v756 = vsub.f32 1.0, %v755
  %v757 = vmul.f32 %v754, %v756
  %v758 = vadd.f32 %v754, %v757
  %vm759 = vweird.f32 %v677
  %vm760 = vweird.f32 %v754
  %vm761 = vmor %vm759, %vm760
  %v762 = vsel %vm761, %v754, %v758
  %v763 = vand.u32 2147483647, %v677
  %vm764 = vcmp.eq.f32.partialorder %v763, 8.507059e+37
  %v765 = vand.u32 %v677, 2147483648
  %v766 = vor.u32 1.1754944e-38, %v765
  %v767 = vsel %vm764, %v766, %v762
  %v768 = vrcp.pop %v680
  %v769 = vmul.f32 %v680, %v768
  %v770 = vsub.f32 1.0, %v769
  %v771 = vmul.f32 %v768, %v770
  %v772 = vadd.f32 %v768, %v771
  %vm773 = vweird.f32 %v680
  %vm774 = vweird.f32 %v768
  %vm775 = vmor %vm773, %vm774
  %v776 = vsel %vm775, %v768, %v772
  %v777 = vand.u32 2147483647, %v680
  %vm778 = vcmp.eq.f32.partialorder %v777, 8.507059e+37
  %v779 = vand.u32 %v680, 2147483648
  %v780 = vor.u32 1.1754944e-38, %v779
  %v781 = vsel %vm778, %v780, %v776
  %v782 = vrcp.pop %v683
  %v783 = vmul.f32 %v683, %v782
  %v784 = vsub.f32 1.0, %v783
  %v785 = vmul.f32 %v782, %v784
  %v786 = vadd.f32 %v782, %v785
  %vm787 = vweird.f32 %v683
  %vm788 = vweird.f32 %v782
  %vm789 = vmor %vm787, %vm788
  %v790 = vsel %vm789, %v782, %v786
  %v791 = vand.u32 2147483647, %v683
  %vm792 = vcmp.eq.f32.partialorder %v791, 8.507059e+37
  %v793 = vand.u32 %v683, 2147483648
  %v794 = vor.u32 1.1754944e-38, %v793
  %v795 = vsel %vm792, %v794, %v790
  %v796 = vmul.f32 %v645, %v697
  %v797 = vmul.f32 %v647, %v711
  %v798 = vmul.f32 %v649, %v725
  %v799 = vmul.f32 %v651, %v739
  %v800 = vmul.f32 %v653, %v753
  %v801 = vmul.f32 %v655, %v767
  %v802 = vmul.f32 %v657, %v781
  %v803 = vmul.f32 %v659, %v795
  %804 = vrot.lane.b32.xlu0 %v234, 64
  %v805 = vpop.permute.xlu0 %804
  %806 = vrot.lane.b32.xlu0 %v237, 64
  %v807 = vpop.permute.xlu0 %806
  %808 = vrot.lane.b32.xlu0 %v240, 64
  %v809 = vpop.permute.xlu0 %808
  %810 = vrot.lane.b32.xlu0 %v243, 64
  %v811 = vpop.permute.xlu0 %810
  %812 = vrot.lane.b32.xlu0 %v246, 64
  %v813 = vpop.permute.xlu0 %812
  %814 = vrot.lane.b32.xlu0 %v249, 64
  %v815 = vpop.permute.xlu0 %814
  %816 = vrot.lane.b32.xlu0 %v252, 64
  %v817 = vpop.permute.xlu0 %816
  %818 = vrot.lane.b32.xlu0 %v255, 64
  %v819 = vpop.permute.xlu0 %818
  %v829 = vsel %vm611, %v796, 0
  %v832 = vsel %vm611, %v797, 0
  %v835 = vsel %vm611, %v798, 0
  %v838 = vsel %vm611, %v799, 0
  %v841 = vsel %vm611, %v800, 0
  %v844 = vsel %vm611, %v801, 0
  %v847 = vsel %vm611, %v802, 0
  %v850 = vsel %vm611, %v803, 0
  %852 = vmatpush.msra.mxu0 0.0
  %853 = vmatpush.msra.mxu0 0.0
  %854 = vmatpush.msra.mxu0 0.0
  %855 = vmatpush.msra.mxu0 0.0
  %856 = vmatpush.msra.mxu0 0.0
  %857 = vmatpush.msra.mxu0 0.0
  %858 = vmatpush.msra.mxu0 0.0
  %859 = vmatpush.msra.mxu0 0.0
  %860 = vmatpush.msra.mxu0 %v819
  %861 = vmatpush.msra.mxu0 %v817
  %862 = vmatpush.msra.mxu0 %v815
  %863 = vmatpush.msra.mxu0 %v813
  %864 = vmatpush.msra.mxu0 %v811
  %865 = vmatpush.msra.mxu0 %v809
  %866 = vmatpush.msra.mxu0 %v807
  %867 = vmatpush.msra.mxu0 %v805
  %868 = vmatmul.f32.gmra.mxu0 %v829
  %v869 = vpop.f32.mrf.mxu0
  %v870 = vadd.f32 0.0, %v869
  %871 = vmatmul.f32.gmra.mxu0 %v832
  %v872 = vpop.f32.mrf.mxu0
  %v873 = vadd.f32 0.0, %v872
  %874 = vmatmul.f32.gmra.mxu0 %v835
  %v875 = vpop.f32.mrf.mxu0
  %v876 = vadd.f32 0.0, %v875
  %877 = vmatmul.f32.gmra.mxu0 %v838
  %v878 = vpop.f32.mrf.mxu0
  %v879 = vadd.f32 0.0, %v878
  %880 = vmatmul.f32.gmra.mxu0 %v841
  %v881 = vpop.f32.mrf.mxu0
  %v882 = vadd.f32 0.0, %v881
  %883 = vmatmul.f32.gmra.mxu0 %v844
  %v884 = vpop.f32.mrf.mxu0
  %v885 = vadd.f32 0.0, %v884
  %886 = vmatmul.f32.gmra.mxu0 %v847
  %v887 = vpop.f32.mrf.mxu0
  %v888 = vadd.f32 0.0, %v887
  %889 = vmatmul.f32.gmra.mxu0 %v850
  %v890 = vpop.f32.mrf.mxu0
  %v891 = vadd.f32 0.0, %v890
  %892 = vdwg.mxu0
  %v893 = vperm.slane %v33, 2
  %898 = vrot.lane.b32.xlu0 %v25, 32
  %v899 = vpop.permute.xlu0 %898
  %900 = vrot.lane.b32.xlu0 %v27, 32
  %v901 = vpop.permute.xlu0 %900
  %902 = vrot.lane.b32.xlu0 %v29, 32
  %v903 = vpop.permute.xlu0 %902
  %904 = vrot.lane.b32.xlu0 %v31, 32
  %v905 = vpop.permute.xlu0 %904
  %v911 = vsel %vm91, %v870, 0
  %v914 = vsel %vm91, %v873, 0
  %v917 = vsel %vm91, %v876, 0
  %v920 = vsel %vm91, %v879, 0
  %v923 = vsel %vm91, %v882, 0
  %v926 = vsel %vm91, %v885, 0
  %v929 = vsel %vm91, %v888, 0
  %v932 = vsel %vm91, %v891, 0
  %934 = vmatpush.msra.mxu0 0.0
  %935 = vmatpush.msra.mxu0 0.0
  %936 = vmatpush.msra.mxu0 0.0
  %937 = vmatpush.msra.mxu0 0.0
  %938 = vmatpush.msra.mxu0 0.0
  %939 = vmatpush.msra.mxu0 0.0
  %940 = vmatpush.msra.mxu0 0.0
  %941 = vmatpush.msra.mxu0 0.0
  %942 = vmatpush.msra.mxu0 0.0
  %943 = vmatpush.msra.mxu0 0.0
  %944 = vmatpush.msra.mxu0 0.0
  %945 = vmatpush.msra.mxu0 0.0
  %946 = vmatpush.msra.mxu0 %v905
  %947 = vmatpush.msra.mxu0 %v903
  %948 = vmatpush.msra.mxu0 %v901
  %949 = vmatpush.msra.mxu0 %v899
  %950 = vmatmul.f32.gmra.mxu0 %v911
  %v951 = vpop.f32.mrf.mxu0
  %v952 = vadd.f32 %v893, %v951
  %953 = vmatmul.f32.gmra.mxu0 %v914
  %v954 = vpop.f32.mrf.mxu0
  %v955 = vadd.f32 %v893, %v954
  %956 = vmatmul.f32.gmra.mxu0 %v917
  %v957 = vpop.f32.mrf.mxu0
  %v958 = vadd.f32 %v893, %v957
  %959 = vmatmul.f32.gmra.mxu0 %v920
  %v960 = vpop.f32.mrf.mxu0
  %v961 = vadd.f32 %v893, %v960
  %962 = vmatmul.f32.gmra.mxu0 %v923
  %v963 = vpop.f32.mrf.mxu0
  %v964 = vadd.f32 %v893, %v963
  %965 = vmatmul.f32.gmra.mxu0 %v926
  %v966 = vpop.f32.mrf.mxu0
  %v967 = vadd.f32 %v893, %v966
  %968 = vmatmul.f32.gmra.mxu0 %v929
  %v969 = vpop.f32.mrf.mxu0
  %v970 = vadd.f32 %v893, %v969
  %971 = vmatmul.f32.gmra.mxu0 %v932
  %v972 = vpop.f32.mrf.mxu0
  %v973 = vadd.f32 %v893, %v972
  %974 = vdwg.mxu0
  %v975 = vadd.f32 %v952, %v17
  %v976 = vadd.f32 %v955, %v18
  %v977 = vadd.f32 %v958, %v19
  %v978 = vadd.f32 %v961, %v20
  %v979 = vadd.f32 %v964, %v21
  %v980 = vadd.f32 %v967, %v22
  %v981 = vadd.f32 %v970, %v23
  %v982 = vadd.f32 %v973, %v24
  %v983 = vmul.f32 %v975, %v75
  %v984 = vmul.f32 %v976, %v76
  %v985 = vmul.f32 %v977, %v77
  %v986 = vmul.f32 %v978, %v78
  %v987 = vmul.f32 %v979, %v79
  %v988 = vmul.f32 %v980, %v80
  %v989 = vmul.f32 %v981, %v81
  %v990 = vmul.f32 %v982, %v82
  %v991 = vsel %vm91, %v983, 0.0
  %v992 = vsel %vm91, %v984, 0.0
  %v993 = vadd.f32 %v991, %v992
  %v994 = vsel %vm91, %v985, 0.0
  %v995 = vadd.f32 %v993, %v994
  %v996 = vsel %vm91, %v986, 0.0
  %v997 = vadd.f32 %v995, %v996
  %v998 = vsel %vm91, %v987, 0.0
  %v999 = vadd.f32 %v997, %v998
  %v1000 = vsel %vm91, %v988, 0.0
  %v1001 = vadd.f32 %v999, %v1000
  %v1002 = vsel %vm91, %v989, 0.0
  %v1003 = vadd.f32 %v1001, %v1002
  %v1004 = vsel %vm91, %v990, 0.0
  %v1005 = vadd.f32 %v1003, %v1004
  %v1006 = vrot.slane %v1005, 4
  %v1007 = vadd.f32 %v1005, %v1006
  %v1008 = vrot.slane %v1007, 2
  %v1009 = vadd.f32 %v1007, %v1008
  %v1010 = vrot.slane %v1009, 1
  %v1011 = vadd.f32 %v1009, %v1010
  %v1012 = vmul.f32 %v1011, 0.016129032
  %v1013 = vmul.f32 %v983, %v975
  %v1014 = vmul.f32 %v984, %v976
  %v1015 = vmul.f32 %v985, %v977
  %v1016 = vmul.f32 %v986, %v978
  %v1017 = vmul.f32 %v987, %v979
  %v1018 = vmul.f32 %v988, %v980
  %v1019 = vmul.f32 %v989, %v981
  %v1020 = vmul.f32 %v990, %v982
  %v1021 = vsel %vm91, %v1013, 0.0
  %v1022 = vsel %vm91, %v1014, 0.0
  %v1023 = vadd.f32 %v1021, %v1022
  %v1024 = vsel %vm91, %v1015, 0.0
  %v1025 = vadd.f32 %v1023, %v1024
  %v1026 = vsel %vm91, %v1016, 0.0
  %v1027 = vadd.f32 %v1025, %v1026
  %v1028 = vsel %vm91, %v1017, 0.0
  %v1029 = vadd.f32 %v1027, %v1028
  %v1030 = vsel %vm91, %v1018, 0.0
  %v1031 = vadd.f32 %v1029, %v1030
  %v1032 = vsel %vm91, %v1019, 0.0
  %v1033 = vadd.f32 %v1031, %v1032
  %v1034 = vsel %vm91, %v1020, 0.0
  %v1035 = vadd.f32 %v1033, %v1034
  %v1036 = vrot.slane %v1035, 4
  %v1037 = vadd.f32 %v1035, %v1036
  %v1038 = vrot.slane %v1037, 2
  %v1039 = vadd.f32 %v1037, %v1038
  %v1040 = vrot.slane %v1039, 1
  %v1041 = vadd.f32 %v1039, %v1040
  %v1042 = vmul.f32 %v1041, 0.016129032
  %v1043 = vmul.f32 %v1012, %v1012
  %v1044 = vsub.f32 %v1042, %v1043
  %v1045 = vmax.f32 %v1044, 0.0
  %v1046 = vsub.f32 %v975, %v1012
  %v1047 = vsub.f32 %v976, %v1012
  %v1048 = vsub.f32 %v977, %v1012
  %v1049 = vsub.f32 %v978, %v1012
  %v1050 = vsub.f32 %v979, %v1012
  %v1051 = vsub.f32 %v980, %v1012
  %v1052 = vsub.f32 %v981, %v1012
  %v1053 = vsub.f32 %v982, %v1012
  %v1054 = vadd.f32 %v1045, 1e-05
  %v1055 = vrsqrt.pop %v1054
  %v1056 = vmul.f32 %v1055, %v1054
  %v1057 = vmul.f32 %v1056, %v1055
  %v1058 = vmul.f32 0.5, %v1057
  %v1059 = vsub.f32 1.5, %v1058
  %v1060 = vmul.f32 %v1055, %v1059
  %vm1061 = vweird.f32 %v1054
  %vm1062 = vweird.f32 %v1055
  %vm1063 = vmor %vm1061, %vm1062
  %v1064 = vsel %vm1063, %v1055, %v1060
  %v1065 = vmul.f32 %v1046, %v1064
  %v1066 = vmul.f32 %v1047, %v1064
  %v1067 = vmul.f32 %v1048, %v1064
  %v1068 = vmul.f32 %v1049, %v1064
  %v1069 = vmul.f32 %v1050, %v1064
  %v1070 = vmul.f32 %v1051, %v1064
  %v1071 = vmul.f32 %v1052, %v1064
  %v1072 = vmul.f32 %v1053, %v1064
  %v1073 = vperm.slane %v33, 3
  %v1074 = vmul.f32 %v1065, %v1073
  %v1075 = vmul.f32 %v1066, %v1073
  %v1076 = vmul.f32 %v1067, %v1073
  %v1077 = vmul.f32 %v1068, %v1073
  %v1078 = vmul.f32 %v1069, %v1073
  %v1079 = vmul.f32 %v1070, %v1073
  %v1080 = vmul.f32 %v1071, %v1073
  %v1081 = vmul.f32 %v1072, %v1073
  %v1082 = vperm.slane %v33, 4
  %v1083 = vadd.f32 %v1074, %v1082
  %v1084 = vadd.f32 %v1075, %v1082
  %v1085 = vadd.f32 %v1076, %v1082
  %v1086 = vadd.f32 %v1077, %v1082
  %v1087 = vadd.f32 %v1078, %v1082
  %v1088 = vadd.f32 %v1079, %v1082
  %v1089 = vadd.f32 %v1080, %v1082
  %v1090 = vadd.f32 %v1081, %v1082
  %v1091 = vmax.f32 %v1083, 0.0
  %v1092 = vmax.f32 %v1084, 0.0
  %v1093 = vmax.f32 %v1085, 0.0
  %v1094 = vmax.f32 %v1086, 0.0
  %v1095 = vmax.f32 %v1087, 0.0
  %v1096 = vmax.f32 %v1088, 0.0
  %v1097 = vmax.f32 %v1089, 0.0
  %v1098 = vmax.f32 %v1090, 0.0
  %v1100 = vsel %vm91, %v1091, 0
  %v1103 = vsel %vm91, %v1092, 0
  %v1106 = vsel %vm91, %v1093, 0
  %v1109 = vsel %vm91, %v1094, 0
  %v1112 = vsel %vm91, %v1095, 0
  %v1115 = vsel %vm91, %v1096, 0
  %v1118 = vsel %vm91, %v1097, 0
  %v1121 = vsel %vm91, %v1098, 0
  %1123 = vmatpush.msra.mxu0 0.0
  %1124 = vmatpush.msra.mxu0 0.0
  %1125 = vmatpush.msra.mxu0 0.0
  %1126 = vmatpush.msra.mxu0 0.0
  %1127 = vmatpush.msra.mxu0 0.0
  %1128 = vmatpush.msra.mxu0 0.0
  %1129 = vmatpush.msra.mxu0 0.0
  %1130 = vmatpush.msra.mxu0 0.0
  %1131 = vmatpush.msra.mxu0 0.0
  %1132 = vmatpush.msra.mxu0 0.0
  %1133 = vmatpush.msra.mxu0 0.0
  %1134 = vmatpush.msra.mxu0 0.0
  %1135 = vmatpush.msra.mxu0 %v32
  %1136 = vmatpush.msra.mxu0 %v30
  %1137 = vmatpush.msra.mxu0 %v28
  %1138 = vmatpush.msra.mxu0 %v26
  %1139 = vmatmul.f32.gmra.mxu0 %v1100
  %v1140 = vpop.f32.mrf.mxu0
  %v1141 = vadd.f32 0.0, %v1140
  %1142 = vmatmul.f32.gmra.mxu0 %v1103
  %v1143 = vpop.f32.mrf.mxu0
  %v1144 = vadd.f32 0.0, %v1143
  %1145 = vmatmul.f32.gmra.mxu0 %v1106
  %v1146 = vpop.f32.mrf.mxu0
  %v1147 = vadd.f32 0.0, %v1146
  %1148 = vmatmul.f32.gmra.mxu0 %v1109
  %v1149 = vpop.f32.mrf.mxu0
  %v1150 = vadd.f32 0.0, %v1149
  %1151 = vmatmul.f32.gmra.mxu0 %v1112
  %v1152 = vpop.f32.mrf.mxu0
  %v1153 = vadd.f32 0.0, %v1152
  %1154 = vmatmul.f32.gmra.mxu0 %v1115
  %v1155 = vpop.f32.mrf.mxu0
  %v1156 = vadd.f32 0.0, %v1155
  %1157 = vmatmul.f32.gmra.mxu0 %v1118
  %v1158 = vpop.f32.mrf.mxu0
  %v1159 = vadd.f32 0.0, %v1158
  %1160 = vmatmul.f32.gmra.mxu0 %v1121
  %v1161 = vpop.f32.mrf.mxu0
  %v1162 = vadd.f32 0.0, %v1161
  %1163 = vdwg.mxu0
  %v1164 = vmul.f32 %v1141, %v75
  %v1165 = vmul.f32 %v1144, %v76
  %v1166 = vmul.f32 %v1147, %v77
  %v1167 = vmul.f32 %v1150, %v78
  %v1168 = vmul.f32 %v1153, %v79
  %v1169 = vmul.f32 %v1156, %v80
  %v1170 = vmul.f32 %v1159, %v81
  %v1171 = vmul.f32 %v1162, %v82
  %v1172 = vsel %vm611, %v1164, 0.0
  %v1173 = vsel %vm611, %v1165, 0.0
  %v1174 = vadd.f32 %v1172, %v1173
  %v1175 = vsel %vm611, %v1166, 0.0
  %v1176 = vadd.f32 %v1174, %v1175
  %v1177 = vsel %vm611, %v1167, 0.0
  %v1178 = vadd.f32 %v1176, %v1177
  %v1179 = vsel %vm611, %v1168, 0.0
  %v1180 = vadd.f32 %v1178, %v1179
  %v1181 = vsel %vm611, %v1169, 0.0
  %v1182 = vadd.f32 %v1180, %v1181
  %v1183 = vsel %vm611, %v1170, 0.0
  %v1184 = vadd.f32 %v1182, %v1183
  %v1185 = vsel %vm611, %v1171, 0.0
  %v1186 = vadd.f32 %v1184, %v1185
  %v1187 = vrot.slane %v1186, 4
  %v1188 = vadd.f32 %v1186, %v1187
  %v1189 = vrot.slane %v1188, 2
  %v1190 = vadd.f32 %v1188, %v1189
  %v1191 = vrot.slane %v1190, 1
  %v1192 = vadd.f32 %v1190, %v1191
  %v1193 = vmul.f32 %v1192, 0.016129032
  %v1194 = vmul.f32 %v1164, %v1141
  %v1195 = vmul.f32 %v1165, %v1144
  %v1196 = vmul.f32 %v1166, %v1147
  %v1197 = vmul.f32 %v1167, %v1150
  %v1198 = vmul.f32 %v1168, %v1153
  %v1199 = vmul.f32 %v1169, %v1156
  %v1200 = vmul.f32 %v1170, %v1159
  %v1201 = vmul.f32 %v1171, %v1162
  %v1202 = vsel %vm611, %v1194, 0.0
  %v1203 = vsel %vm611, %v1195, 0.0
  %v1204 = vadd.f32 %v1202, %v1203
  %v1205 = vsel %vm611, %v1196, 0.0
  %v1206 = vadd.f32 %v1204, %v1205
  %v1207 = vsel %vm611, %v1197, 0.0
  %v1208 = vadd.f32 %v1206, %v1207
  %v1209 = vsel %vm611, %v1198, 0.0
  %v1210 = vadd.f32 %v1208, %v1209
  %v1211 = vsel %vm611, %v1199, 0.0
  %v1212 = vadd.f32 %v1210, %v1211
  %v1213 = vsel %vm611, %v1200, 0.0
  %v1214 = vadd.f32 %v1212, %v1213
  %v1215 = vsel %vm611, %v1201, 0.0
  %v1216 = vadd.f32 %v1214, %v1215
  %v1217 = vrot.slane %v1216, 4
  %v1218 = vadd.f32 %v1216, %v1217
  %v1219 = vrot.slane %v1218, 2
  %v1220 = vadd.f32 %v1218, %v1219
  %v1221 = vrot.slane %v1220, 1
  %v1222 = vadd.f32 %v1220, %v1221
  %v1223 = vmul.f32 %v1222, 0.016129032
  %v1224 = vmul.f32 %v1193, %v1193
  %v1225 = vsub.f32 %v1223, %v1224
  %v1226 = vmax.f32 %v1225, 0.0
  %v1227 = vsub.f32 %v1141, %v1193
  %v1228 = vsub.f32 %v1144, %v1193
  %v1229 = vsub.f32 %v1147, %v1193
  %v1230 = vsub.f32 %v1150, %v1193
  %v1231 = vsub.f32 %v1153, %v1193
  %v1232 = vsub.f32 %v1156, %v1193
  %v1233 = vsub.f32 %v1159, %v1193
  %v1234 = vsub.f32 %v1162, %v1193
  %v1235 = vadd.f32 %v1226, 1e-05
  %v1236 = vrsqrt.pop %v1235
  %v1237 = vmul.f32 %v1236, %v1235
  %v1238 = vmul.f32 %v1237, %v1236
  %v1239 = vmul.f32 0.5, %v1238
  %v1240 = vsub.f32 1.5, %v1239
  %v1241 = vmul.f32 %v1236, %v1240
  %vm1242 = vweird.f32 %v1235
  %vm1243 = vweird.f32 %v1236
  %vm1244 = vmor %vm1242, %vm1243
  %v1245 = vsel %vm1244, %v1236, %v1241
  %v1246 = vmul.f32 %v1227, %v1245
  %v1247 = vmul.f32 %v1228, %v1245
  %v1248 = vmul.f32 %v1229, %v1245
  %v1249 = vmul.f32 %v1230, %v1245
  %v1250 = vmul.f32 %v1231, %v1245
  %v1251 = vmul.f32 %v1232, %v1245
  %v1252 = vmul.f32 %v1233, %v1245
  %v1253 = vmul.f32 %v1234, %v1245
  %v1254 = vperm.slane %v33, 5
  %v1255 = vmul.f32 %v1246, %v1254
  %v1256 = vmul.f32 %v1247, %v1254
  %v1257 = vmul.f32 %v1248, %v1254
  %v1258 = vmul.f32 %v1249, %v1254
  %v1259 = vmul.f32 %v1250, %v1254
  %v1260 = vmul.f32 %v1251, %v1254
  %v1261 = vmul.f32 %v1252, %v1254
  %v1262 = vmul.f32 %v1253, %v1254
  %v1263 = vperm.slane %v33, 6
  %v1264 = vadd.f32 %v1255, %v1263
  %v1265 = vadd.f32 %v1256, %v1263
  %v1266 = vadd.f32 %v1257, %v1263
  %v1267 = vadd.f32 %v1258, %v1263
  %v1268 = vadd.f32 %v1259, %v1263
  %v1269 = vadd.f32 %v1260, %v1263
  %v1270 = vadd.f32 %v1261, %v1263
  %v1271 = vadd.f32 %v1262, %v1263
  %v1272 = vmax.f32 %v1264, 0.0
  %v1273 = vmax.f32 %v1265, 0.0
  %v1274 = vmax.f32 %v1266, 0.0
  %v1275 = vmax.f32 %v1267, 0.0
  %v1276 = vmax.f32 %v1268, 0.0
  %v1277 = vmax.f32 %v1269, 0.0
  %v1278 = vmax.f32 %v1270, 0.0
  %v1279 = vmax.f32 %v1271, 0.0
  %v1280 = vld [vmem:[%s2] sm:$0xff]
  %v1281 = vld [vmem:[%s2 + $0x8] sm:$0xff]
  %v1282 = vld [vmem:[%s2 + $0x10] sm:$0xff]
  %v1283 = vld [vmem:[%s2 + $0x18] sm:$0xff]
  %v1284 = vld [vmem:[%s2 + $0x20] sm:$0xff]
  %v1285 = vld [vmem:[%s2 + $0x28] sm:$0xff]
  %v1286 = vld [vmem:[%s2 + $0x30] sm:$0xff]
  %v1287 = vld [vmem:[%s2 + $0x38] sm:$0xff]
  %v1289 = vsel %vm611, %v1272, 0
  %v1292 = vsel %vm611, %v1273, 0
  %v1295 = vsel %vm611, %v1274, 0
  %v1298 = vsel %vm611, %v1275, 0
  %v1301 = vsel %vm611, %v1276, 0
  %v1304 = vsel %vm611, %v1277, 0
  %v1307 = vsel %vm611, %v1278, 0
  %v1310 = vsel %vm611, %v1279, 0
  %1312 = vmatpush.msra.mxu0 0.0
  %1313 = vmatpush.msra.mxu0 0.0
  %1314 = vmatpush.msra.mxu0 0.0
  %1315 = vmatpush.msra.mxu0 0.0
  %1316 = vmatpush.msra.mxu0 0.0
  %1317 = vmatpush.msra.mxu0 0.0
  %1318 = vmatpush.msra.mxu0 0.0
  %1319 = vmatpush.msra.mxu0 0.0
  %1320 = vmatpush.msra.mxu0 %v1287
  %1321 = vmatpush.msra.mxu0 %v1286
  %1322 = vmatpush.msra.mxu0 %v1285
  %1323 = vmatpush.msra.mxu0 %v1284
  %1324 = vmatpush.msra.mxu0 %v1283
  %1325 = vmatpush.msra.mxu0 %v1282
  %1326 = vmatpush.msra.mxu0 %v1281
  %1327 = vmatpush.msra.mxu0 %v1280
  %1328 = vmatmul.f32.gmra.mxu0 %v1289
  %v1329 = vpop.f32.mrf.mxu0
  %v1330 = vadd.f32 0.0, %v1329
  %1331 = vmatmul.f32.gmra.mxu0 %v1292
  %v1332 = vpop.f32.mrf.mxu0
  %v1333 = vadd.f32 0.0, %v1332
  %1334 = vmatmul.f32.gmra.mxu0 %v1295
  %v1335 = vpop.f32.mrf.mxu0
  %v1336 = vadd.f32 0.0, %v1335
  %1337 = vmatmul.f32.gmra.mxu0 %v1298
  %v1338 = vpop.f32.mrf.mxu0
  %v1339 = vadd.f32 0.0, %v1338
  %1340 = vmatmul.f32.gmra.mxu0 %v1301
  %v1341 = vpop.f32.mrf.mxu0
  %v1342 = vadd.f32 0.0, %v1341
  %1343 = vmatmul.f32.gmra.mxu0 %v1304
  %v1344 = vpop.f32.mrf.mxu0
  %v1345 = vadd.f32 0.0, %v1344
  %1346 = vmatmul.f32.gmra.mxu0 %v1307
  %v1347 = vpop.f32.mrf.mxu0
  %v1348 = vadd.f32 0.0, %v1347
  %1349 = vmatmul.f32.gmra.mxu0 %v1310
  %v1350 = vpop.f32.mrf.mxu0
  %v1351 = vadd.f32 0.0, %v1350
  %1352 = vdwg.mxu0
  %v1353 = vadd.f32 %v975, %v1330
  %v1354 = vadd.f32 %v976, %v1333
  %v1355 = vadd.f32 %v977, %v1336
  %v1356 = vadd.f32 %v978, %v1339
  %v1357 = vadd.f32 %v979, %v1342
  %v1358 = vadd.f32 %v980, %v1345
  %v1359 = vadd.f32 %v981, %v1348
  %v1360 = vadd.f32 %v982, %v1351
  %1361 = vst.msk [vmem:[%s4] sm:$0xff] %vm91, %v1353
  %1362 = vst.msk [vmem:[%s4 + $0x8] sm:$0xff] %vm91, %v1354
  %1363 = vst.msk [vmem:[%s4 + $0x10] sm:$0xff] %vm91, %v1355
  %1364 = vst.msk [vmem:[%s4 + $0x18] sm:$0xff] %vm91, %v1356
  %1365 = vst.msk [vmem:[%s4 + $0x20] sm:$0xff] %vm91, %v1357
  %1366 = vst.msk [vmem:[%s4 + $0x28] sm:$0xff] %vm91, %v1358
  %1367 = vst.msk [vmem:[%s4 + $0x30] sm:$0xff] %vm91, %v1359
  %1368 = vst.msk [vmem:[%s4 + $0x38] sm:$0xff] %vm91, %v1360
  // Predicated region
  $region18: #{tpu_custom_call.1} parent=0 // pred_check
    _
  $region19: #{tpu_custom_call.1} parent=0 // pred_check_branch
    %1370 = sbr.rel (0) target = $region21
  $region20: #{tpu_custom_call.1} parent=0 // pred_region
    _
  $region21: #{tpu_custom_call.1} parent=0 // pred_fallthru
    _
  // Predicated region
  $region22: #{tpu_custom_call.1} parent=0 // pred_check
    _
  $region23: #{tpu_custom_call.1} parent=0 // pred_check_branch
    %1372 = sbr.rel (0) target = $region25
  $region24: #{tpu_custom_call.1} parent=0 // pred_region
    _
  $region25: #{tpu_custom_call.1} parent=0 // pred_fallthru
    _

</llo_original>
